<compile_context>
chip_gen: v7x
topology: tpu7x:2x2x1
jax: 0.10.0
libtpu: 0.0.40
codegen_flags: <defaults>
</compile_context>

<pallas_src>
import math

import numpy as np
import jax
import jax.numpy as jnp
from jax import lax
from jax.experimental import pallas as pl
from jax.experimental.pallas import tpu as pltpu


# --------------------------------------------------------------------------
# Fused Pallas kernel: conv1+ReLU -> conv2+ReLU -> folded (lin1;lin2) + bias
# (convs pre-lowered to dense matrices over the NCHW-flat activation)
# --------------------------------------------------------------------------
def _convnn_fused_kernel(x_ref, w1_ref, w2_ref, w34_ref, b34_ref, o_ref):
    # In-kernel bf16 cast of the f32 input (VPU work, hidden under the MXU).
    x = x_ref[...].astype(jnp.bfloat16)
    # conv1 as dense matmul + ReLU:   [tm,1024] @ [1024,512]
    h = jnp.dot(x, w1_ref[...], preferred_element_type=jnp.float32)
    h = jnp.maximum(h, 0.0).astype(jnp.bfloat16)
    # conv2 as dense matmul + ReLU:   [tm,512] @ [512,256]
    h = jnp.dot(h, w2_ref[...], preferred_element_type=jnp.float32)
    h = jnp.maximum(h, 0.0).astype(jnp.bfloat16)
    # Folded Linear(256,256);Linear(256,10) (zero-padded to 128 output lanes)
    o = jnp.dot(h, w34_ref[...], preferred_element_type=jnp.float32) + b34_ref[...]
    o_ref[...] = o.astype(o_ref.dtype)


def _round_up(x, m):
    return ((x + m - 1) // m) * m


def _pick_tm(batch):
    """M tile: fill the MXU M-dim; cap at 128 on v5e, 256 otherwise."""
    kind = ""
    try:
        kind = jax.devices()[0].device_kind.lower()
    except Exception:
        pass
    cap = 128 if "v5" in kind else 256
    return max(8, min(_round_up(batch, 8), cap))


def convnn_forward(p, x_nchw, *, out_size=10):
    """p: preprocessed params from init_convnn_params; x_nchw: [B,C,H,W] (or [C,H,W])."""
    if x_nchw.ndim == 3:                                   # x.view(1, *x.shape)
        x_nchw = x_nchw[None]
    B, C, H, W = x_nchw.shape
    K1, N1 = p["w1"].shape                                 # [1024, 512]
    N2 = p["w2"].shape[1]                                  # 256
    NP = p["w34"].shape[1]                                 # 128 (lane-padded output)
    assert H == W and C * H * W == K1                      # in_wh / channels check

    # NCHW .view(B, -1) is a plain reshape (layout-trivial); keep f32, cast in-kernel.
    x_flat = x_nchw.reshape(B, K1)

    tm = _pick_tm(B)
    grid_m = (B + tm - 1) // tm
    B_pad = grid_m * tm
    if B_pad != B:                                         # zero-pad the M tail
        x_flat = jnp.pad(x_flat, ((0, B_pad - B), (0, 0)))

    full = lambda i: (0, 0)
    row = lambda i: (i, 0)
    out = pl.pallas_call(
        _convnn_fused_kernel,
        out_shape=jax.ShapeDtypeStruct((B_pad, NP), jnp.float32),
        grid=(grid_m,),
        in_specs=[
            pl.BlockSpec((tm, K1), row),    # x (NCHW-flat, f32)
            pl.BlockSpec((K1, N1), full),   # conv1 as dense matrix   [1024,512] bf16
            pl.BlockSpec((N1, N2), full),   # conv2 as dense matrix   [512,256]  bf16
            pl.BlockSpec((N2, NP), full),   # folded lin1@lin2        [256,128]  bf16
            pl.BlockSpec((1, NP), full),    # folded bias (f32)       [1,128]
        ],
        out_specs=pl.BlockSpec((tm, NP), row),
        compiler_params=pltpu.CompilerParams(
            dimension_semantics=("parallel",)),
    )(x_flat, p["w1"], p["w2"], p["w34"], p["b34"])
    return out[:B, :out_size]


# --------------------------------------------------------------------------
# One-time init-side preprocessing
# --------------------------------------------------------------------------
def _conv_to_dense_nchw(w_oihw, H, W, stride, pad):
    """Exact Toeplitz lowering of Conv2d(bias=False):
       out_nchw_flat = in_nchw_flat @ M,   M: [Cin*H*W, Cout*OH*OW]."""
    Cout, Cin, kh, kw = w_oihw.shape
    OH = (H + 2 * pad - kh) // stride + 1
    OW = (W + 2 * pad - kw) // stride + 1
    M = np.zeros((Cin * H * W, Cout * OH * OW), dtype=np.float32)
    w = np.asarray(w_oihw, dtype=np.float32)
    for co in range(Cout):
        for oh in range(OH):
            for ow in range(OW):
                out_idx = (co * OH + oh) * OW + ow
                for ci in range(Cin):
                    for i in range(kh):
                        h = oh * stride - pad + i
                        if h < 0 or h >= H:
                            continue
                        for j in range(kw):
                            x_w = ow * stride - pad + j
                            if x_w < 0 or x_w >= W:
                                continue
                            M[(ci * H + h) * W + x_w, out_idx] = w[co, ci, i, j]
    return M


def init_convnn_params(key):
    channels_lst = [4, 8, 16]
    in_wh, out_size = 16, 10
    lane_pad = 128                                          # lane-dense output width
    wh = in_wh // 2 ** (len(channels_lst) - 1)              # 4
    lin_width = channels_lst[-1] * wh * wh                  # 256
    ks = jax.random.split(key, 6)
    raw = {
        "conv1_w": 0.1 * jax.random.normal(ks[0], (channels_lst[1], channels_lst[0], 4, 4), jnp.float32),
        "conv2_w": 0.1 * jax.random.normal(ks[1], (channels_lst[2], channels_lst[1], 4, 4), jnp.float32),
        "lin1_w": 0.05 * jax.random.normal(ks[2], (lin_width, lin_width), jnp.float32),
        "lin1_b": 0.05 * jax.random.normal(ks[3], (lin_width,), jnp.float32),
        "lin2_w": 0.05 * jax.random.normal(ks[4], (out_size, lin_width), jnp.float32),
        "lin2_b": 0.05 * jax.random.normal(ks[5], (out_size,), jnp.float32),
    }
    # One-time weight preprocessing:
    #  * convs -> dense Toeplitz matrices over the NCHW-flat activation
    #    (absorbs im2col + the NCHW .view(B,-1) flatten order)
    #  * lin1 and lin2 have no activation between them -> fold exactly in f32
    #  * zero-pad the 10-wide output to 128 lanes for a lane-dense out store
    w1 = _conv_to_dense_nchw(raw["conv1_w"], in_wh, in_wh, stride=2, pad=1)            # [1024, 512]
    w2 = _conv_to_dense_nchw(raw["conv2_w"], in_wh // 2, in_wh // 2, stride=2, pad=1)  # [512, 256]
    w3t = np.asarray(raw["lin1_w"], np.float32).T                                      # [256, 256]
    w4t = np.asarray(raw["lin2_w"], np.float32).T                                      # [256, 10]
    b3 = np.asarray(raw["lin1_b"], np.float32)
    b4 = np.asarray(raw["lin2_b"], np.float32)
    w34 = w3t @ w4t                                                                    # [256, 10]
    b34 = b3 @ w4t + b4                                                                # [10]
    w34_pad = np.zeros((lin_width, lane_pad), np.float32)
    w34_pad[:, :out_size] = w34
    b34_pad = np.zeros((1, lane_pad), np.float32)
    b34_pad[0, :out_size] = b34
    p = {
        "w1": jnp.asarray(w1, jnp.bfloat16),
        "w2": jnp.asarray(w2, jnp.bfloat16),
        "w34": jnp.asarray(w34_pad, jnp.bfloat16),
        "b34": jnp.asarray(b34_pad, jnp.float32),
    }
    meta = {"channels_lst": channels_lst, "in_wh": in_wh, "out_size": out_size}
    return p, raw, meta


# --------------------------------------------------------------------------
# Pure-JAX f32 reference (PyTorch semantics) for in-script verification
# --------------------------------------------------------------------------
def reference_forward(raw, x_nchw):
    x = x_nchw.astype(jnp.float32)
    if x.ndim == 3:
        x = x[None]
    for w in (raw["conv1_w"], raw["conv2_w"]):
        x = lax.conv_general_dilated(x, w, window_strides=(2, 2),
                                     padding=((1, 1), (1, 1)),
                                     dimension_numbers=("NCHW", "OIHW", "NCHW"))
        x = jnp.maximum(x, 0.0)
    x = x.reshape(x.shape[0], -1)                          # NCHW .view(B, -1)
    x = x @ raw["lin1_w"].T + raw["lin1_b"]
    x = x @ raw["lin2_w"].T + raw["lin2_b"]
    return x


if __name__ == "__main__":
    key = jax.random.PRNGKey(0)
    k_param, k_x = jax.random.split(key)
    params, raw, meta = init_convnn_params(k_param)
    x = jax.random.normal(k_x, (2, 4, 16, 16), jnp.float32)   # NCHW, in_wh=16, Cin=4

    fwd = jax.jit(convnn_forward)
    out = jax.block_until_ready(fwd(params, x))
    assert out.shape == (2, 10) and out.dtype == jnp.float32

    # Verify against the pure-JAX f32 reference (bf16 MXU inputs -> loose tol).
    ref = jax.block_until_ready(reference_forward(raw, x))
    np.testing.assert_allclose(np.asarray(out), np.asarray(ref), rtol=5e-2, atol=8e-2)
    print("KERNEL_OK")
</pallas_src>

<mosaic_0001>
module attributes {stable_mosaic.version = 11 : i64} {
  func.func @_convnn_fused_kernel(%arg0: i32, %arg1: memref<8x1024xf32, #tpu.memory_space<vmem>>, %arg2: memref<1024x512xbf16, #tpu.memory_space<vmem>>, %arg3: memref<512x256xbf16, #tpu.memory_space<vmem>>, %arg4: memref<256x128xbf16, #tpu.memory_space<vmem>>, %arg5: memref<1x128xf32, #tpu.memory_space<vmem>>, %arg6: memref<8x128xf32, #tpu.memory_space<vmem>>) attributes {dimension_semantics = [#tpu.dimension_semantics<parallel>], iteration_bounds = array<i64: 1>, scalar_prefetch = 0 : i64, scratch_operands = 0 : i64, tpu.core_type = #tpu.core_type<tc>, window_params = [{transform_indices = @transform_0, window_bounds = array<i64: 8, 1024>}, {pipeline_mode = #tpu.pipeline_mode<synchronous>, transform_indices = @transform_1, window_bounds = array<i64: 1024, 512>}, {pipeline_mode = #tpu.pipeline_mode<synchronous>, transform_indices = @transform_2, window_bounds = array<i64: 512, 256>}, {pipeline_mode = #tpu.pipeline_mode<synchronous>, transform_indices = @transform_3, window_bounds = array<i64: 256, 128>}, {pipeline_mode = #tpu.pipeline_mode<synchronous>, transform_indices = @transform_4, window_bounds = array<i64: 1, 128>}, {transform_indices = @transform_5, window_bounds = array<i64: 8, 128>}]} {
    %c0 = arith.constant 0 : index
    %c0_0 = arith.constant 0 : index
    %0 = vector.load %arg1[%c0, %c0_0] : memref<8x1024xf32, #tpu.memory_space<vmem>>, vector<8x1024xf32>
    %1 = arith.truncf %0 : vector<8x1024xf32> to vector<8x1024xbf16>
    %c0_1 = arith.constant 0 : index
    %c0_2 = arith.constant 0 : index
    %2 = vector.load %arg2[%c0_1, %c0_2] : memref<1024x512xbf16, #tpu.memory_space<vmem>>, vector<1024x512xbf16>
    %cst = arith.constant dense<0.000000e+00> : vector<8x512xf32>
    %3 = tpu.matmul %1, %2, %cst {dimension_numbers = #tpu.dot_dimension_numbers<[1], [0], [0], [1], [0, 0, 1, 1], [], []>} : vector<8x1024xbf16>, vector<1024x512xbf16>, vector<8x512xf32> -> vector<8x512xf32>
    %cst_3 = arith.constant 0.000000e+00 : f32
    %4 = vector.broadcast %cst_3 : f32 to vector<8x512xf32>
    %5 = arith.maximumf %3, %4 : vector<8x512xf32>
    %6 = arith.truncf %5 : vector<8x512xf32> to vector<8x512xbf16>
    %c0_4 = arith.constant 0 : index
    %c0_5 = arith.constant 0 : index
    %7 = vector.load %arg3[%c0_4, %c0_5] : memref<512x256xbf16, #tpu.memory_space<vmem>>, vector<512x256xbf16>
    %cst_6 = arith.constant dense<0.000000e+00> : vector<8x256xf32>
    %8 = tpu.matmul %6, %7, %cst_6 {dimension_numbers = #tpu.dot_dimension_numbers<[1], [0], [0], [1], [0, 0, 1, 1], [], []>} : vector<8x512xbf16>, vector<512x256xbf16>, vector<8x256xf32> -> vector<8x256xf32>
    %cst_7 = arith.constant 0.000000e+00 : f32
    %9 = vector.broadcast %cst_7 : f32 to vector<8x256xf32>
    %10 = arith.maximumf %8, %9 : vector<8x256xf32>
    %11 = arith.truncf %10 : vector<8x256xf32> to vector<8x256xbf16>
    %c0_8 = arith.constant 0 : index
    %c0_9 = arith.constant 0 : index
    %12 = vector.load %arg4[%c0_8, %c0_9] : memref<256x128xbf16, #tpu.memory_space<vmem>>, vector<256x128xbf16>
    %cst_10 = arith.constant dense<0.000000e+00> : vector<8x128xf32>
    %13 = tpu.matmul %11, %12, %cst_10 {dimension_numbers = #tpu.dot_dimension_numbers<[1], [0], [0], [1], [0, 0, 1, 1], [], []>} : vector<8x256xbf16>, vector<256x128xbf16>, vector<8x128xf32> -> vector<8x128xf32>
    %c0_11 = arith.constant 0 : index
    %c0_12 = arith.constant 0 : index
    %14 = vector.load %arg5[%c0_11, %c0_12] : memref<1x128xf32, #tpu.memory_space<vmem>>, vector<1x128xf32>
    %15 = vector.broadcast %14 : vector<1x128xf32> to vector<8x128xf32>
    %16 = arith.addf %13, %15 : vector<8x128xf32>
    %c0_13 = arith.constant 0 : index
    %c0_14 = arith.constant 0 : index
    %17 = vector.load %arg6[%c0_13, %c0_14] : memref<8x128xf32, #tpu.memory_space<vmem>>, vector<8x128xf32>
    tpu.vector_store %arg6[%c0_13, %c0_14], %16 {strides = array<i32>} : memref<8x128xf32, #tpu.memory_space<vmem>>, vector<8x128xf32>,
    return
  }
  func.func @transform_0(%arg0: i32) -> (i32, i32) {
    %c0_i32 = arith.constant 0 : i32
    %c0_i32_0 = arith.constant 0 : i32
    return %arg0, %c0_i32 : i32, i32
  }
  func.func @transform_1(%arg0: i32) -> (i32, i32) {
    %c0_i32 = arith.constant 0 : i32
    %c0_i32_0 = arith.constant 0 : i32
    %c0_i32_1 = arith.constant 0 : i32
    return %c0_i32, %c0_i32_0 : i32, i32
  }
  func.func @transform_2(%arg0: i32) -> (i32, i32) {
    %c0_i32 = arith.constant 0 : i32
    %c0_i32_0 = arith.constant 0 : i32
    %c0_i32_1 = arith.constant 0 : i32
    return %c0_i32, %c0_i32_0 : i32, i32
  }
  func.func @transform_3(%arg0: i32) -> (i32, i32) {
    %c0_i32 = arith.constant 0 : i32
    %c0_i32_0 = arith.constant 0 : i32
    %c0_i32_1 = arith.constant 0 : i32
    return %c0_i32, %c0_i32_0 : i32, i32
  }
  func.func @transform_4(%arg0: i32) -> (i32, i32) {
    %c0_i32 = arith.constant 0 : i32
    %c0_i32_0 = arith.constant 0 : i32
    %c0_i32_1 = arith.constant 0 : i32
    return %c0_i32, %c0_i32_0 : i32, i32
  }
  func.func @transform_5(%arg0: i32) -> (i32, i32) {
    %c0_i32 = arith.constant 0 : i32
    %c0_i32_0 = arith.constant 0 : i32
    return %arg0, %c0_i32 : i32, i32
  }
}

</mosaic_0001>

<llo_original>
// kernel: convnn_forward.1
$region0: #{convnn_forward.1}
  #allocation0 [shape = 'u32[]', space=smem, size = 0x4, offset = 0x4, fixed_abs, tag = 'smem constant byte address 0x4 - core index']
  #allocation1 [shape = 'u32[144,128]{1,0:T(1,128)}', space=vmem, size = 0x12000, scoped, tag = 'internal scratch']
  %s0 = inlined_call_operand.vmem [shape: f32[8,1024], index: 0, kind: input, shape index: {}]
  %s1 = inlined_call_operand.hbm [shape: bf16[1024,512], index: 1, kind: input, shape index: {}]
  %s2 = inlined_call_operand.hbm [shape: bf16[512,256], index: 2, kind: input, shape index: {}]
  %s3 = inlined_call_operand.vmem [shape: bf16[256,128], index: 3, kind: input, shape index: {}]
  %s4 = inlined_call_operand.vmem [shape: f32[1,128], index: 4, kind: input, shape index: {}]
  %s5 = inlined_call_operand.vmem [shape: f32[8,128], index: 5, kind: output, shape index: {}]
  %s6 = sld [smem:[#allocation0]]
  $region38: #{convnn_forward.1} parent=0
    _
  %s8 = ssub.s32 1, %s6
  %s9 = scalar_select 0, %s8, %s6
  $region1: #{convnn_forward.1} parent=0
    #allocation2 [shape = 'u8[1048576]{0}', space=vmem, size = 0x100000, scoped, tag = 'input window, operand 1, single buffered']
    #allocation3 [shape = 's32[1]{0}', space=sflag, size = 0x4, scoped, tag = 'scoped memory for convnn_forward.1']
    #allocation4 [shape = 'u8[262144]{0}', space=vmem, size = 0x40000, scoped, tag = 'input window, operand 2, single buffered']
    #allocation5 [shape = 's32[1]{0}', space=sflag, size = 0x4, scoped, tag = 'scoped memory for convnn_forward.1']
    %10 = vsyncpa [#allocation3], 0
    %11 = vsyncpa [#allocation5], 0
    // Predicated region
    $region2: #{convnn_forward.1} parent=1 // pred_check
      _
    $region3: #{convnn_forward.1} parent=1 // pred_check_branch
      %13 = sbr.rel (0) target = $region5
    $region4: #{convnn_forward.1} parent=1 // pred_region
      _
    $region5: #{convnn_forward.1} parent=1 // pred_fallthru
      _
    // Predicated region
    $region6: #{convnn_forward.1} parent=1 // pred_check
      _
    $region7: #{convnn_forward.1} parent=1 // pred_check_branch
      %15 = sbr.rel (0) target = $region9
    $region8: #{convnn_forward.1} parent=1 // pred_region
      %s17 = ssub.s32 32768, 32768
      %18 = vsyncadd [#allocation3], %s17
      %s19 = sshll.u32 [#allocation2], 4
      %s20 = int_to_ptr.vmem [resolvable:$true] %s19
      %25 = dma.hbm_to_vmem [thread:$0]  %s1, 32768, %s20, [#allocation3], 256, 256, 16
    $region9: #{convnn_forward.1} parent=1 // pred_fallthru
      _
    // Predicated region
    $region10: #{convnn_forward.1} parent=1 // pred_check
      _
    $region11: #{convnn_forward.1} parent=1 // pred_check_branch
      %27 = sbr.rel (0) target = $region13
    $region12: #{convnn_forward.1} parent=1 // pred_region
      %s29 = ssub.s32 8192, 8192
      %30 = vsyncadd [#allocation5], %s29
      %s31 = sshll.u32 [#allocation4], 4
      %s32 = int_to_ptr.vmem [resolvable:$true] %s31
      %37 = dma.hbm_to_vmem [thread:$0]  %s2, 8192, %s32, [#allocation5], 128, 128, 8
    $region13: #{convnn_forward.1} parent=1 // pred_fallthru
      _
    // Predicated region
    $region14: #{convnn_forward.1} parent=1 // pred_check
      _
    $region15: #{convnn_forward.1} parent=1 // pred_check_branch
      %39 = sbr.rel (0) target = $region17
    $region16: #{convnn_forward.1} parent=1 // pred_region
      _
    $region17: #{convnn_forward.1} parent=1 // pred_fallthru
      _
    // Predicated region
    $region18: #{convnn_forward.1} parent=1 // pred_check
      _
    $region19: #{convnn_forward.1} parent=1 // pred_check_branch
      %41 = sbr.rel (0) target = $region21
    $region20: #{convnn_forward.1} parent=1 // pred_region
      _
    $region21: #{convnn_forward.1} parent=1 // pred_fallthru
      _
    // Predicated region
    $region22: #{convnn_forward.1} parent=1 // pred_check
      _
    $region23: #{convnn_forward.1} parent=1 // pred_check_branch
      %43 = sbr.rel (0) target = $region25
    $region24: #{convnn_forward.1} parent=1 // pred_region
      %44 = dma.done [#allocation3], 32768
    $region25: #{convnn_forward.1} parent=1 // pred_fallthru
      _
    // Predicated region
    $region26: #{convnn_forward.1} parent=1 // pred_check
      _
    $region27: #{convnn_forward.1} parent=1 // pred_check_branch
      %46 = sbr.rel (0) target = $region29
    $region28: #{convnn_forward.1} parent=1 // pred_region
      %47 = dma.done [#allocation5], 8192
    $region29: #{convnn_forward.1} parent=1 // pred_fallthru
      _
    %v49 = vld [vmem:[%s0] sm:$0xff]
    %v50 = vld [vmem:[%s0 + $0x8] sm:$0xff]
    %v51 = vld [vmem:[%s0 + $0x10] sm:$0xff]
    %v52 = vld [vmem:[%s0 + $0x18] sm:$0xff]
    %v53 = vld [vmem:[%s0 + $0x20] sm:$0xff]
    %v54 = vld [vmem:[%s0 + $0x28] sm:$0xff]
    %v55 = vld [vmem:[%s0 + $0x30] sm:$0xff]
    %v56 = vld [vmem:[%s0 + $0x38] sm:$0xff]
    %v57 = vpack.c.bf16 %v49, %v49
    %v58 = vpack.c.bf16 %v50, %v50
    %v59 = vpack.c.bf16 %v51, %v51
    %v60 = vpack.c.bf16 %v52, %v52
    %v61 = vpack.c.bf16 %v53, %v53
    %v62 = vpack.c.bf16 %v54, %v54
    %v63 = vpack.c.bf16 %v55, %v55
    %v64 = vpack.c.bf16 %v56, %v56
    %v65 = vld [vmem:[#allocation2] sm:$0xff]
    %v66 = vld [vmem:[#allocation2 + $0x8] sm:$0xff]
    %v67 = vld [vmem:[#allocation2 + $0x10] sm:$0xff]
    %v68 = vld [vmem:[#allocation2 + $0x18] sm:$0xff]
    %v69 = vld [vmem:[#allocation2 + $0x20] sm:$0xff]
    %v70 = vld [vmem:[#allocation2 + $0x28] sm:$0xff]
    %v71 = vld [vmem:[#allocation2 + $0x30] sm:$0xff]
    %v72 = vld [vmem:[#allocation2 + $0x38] sm:$0xff]
    %v73 = vld [vmem:[#allocation2 + $0x40] sm:$0xff]
    %v74 = vld [vmem:[#allocation2 + $0x48] sm:$0xff]
    %v75 = vld [vmem:[#allocation2 + $0x50] sm:$0xff]
    %v76 = vld [vmem:[#allocation2 + $0x58] sm:$0xff]
    %v77 = vld [vmem:[#allocation2 + $0x60] sm:$0xff]
    %v78 = vld [vmem:[#allocation2 + $0x68] sm:$0xff]
    %v79 = vld [vmem:[#allocation2 + $0x70] sm:$0xff]
    %v80 = vld [vmem:[#allocation2 + $0x78] sm:$0xff]
    %v81 = vld [vmem:[#allocation2 + $0x80] sm:$0xff]
    %v82 = vld [vmem:[#allocation2 + $0x88] sm:$0xff]
    %v83 = vld [vmem:[#allocation2 + $0x90] sm:$0xff]
    %v84 = vld [vmem:[#allocation2 + $0x98] sm:$0xff]
    %v85 = vld [vmem:[#allocation2 + $0xa0] sm:$0xff]
    %v86 = vld [vmem:[#allocation2 + $0xa8] sm:$0xff]
    %v87 = vld [vmem:[#allocation2 + $0xb0] sm:$0xff]
    %v88 = vld [vmem:[#allocation2 + $0xb8] sm:$0xff]
    %v89 = vld [vmem:[#allocation2 + $0xc0] sm:$0xff]
    %v90 = vld [vmem:[#allocation2 + $0xc8] sm:$0xff]
    %v91 = vld [vmem:[#allocation2 + $0xd0] sm:$0xff]
    %v92 = vld [vmem:[#allocation2 + $0xd8] sm:$0xff]
    %v93 = vld [vmem:[#allocation2 + $0xe0] sm:$0xff]
    %v94 = vld [vmem:[#allocation2 + $0xe8] sm:$0xff]
    %v95 = vld [vmem:[#allocation2 + $0xf0] sm:$0xff]
    %v96 = vld [vmem:[#allocation2 + $0xf8] sm:$0xff]
    %v97 = vld [vmem:[#allocation2 + $0x100] sm:$0xff]
    %v98 = vld [vmem:[#allocation2 + $0x108] sm:$0xff]
    %v99 = vld [vmem:[#allocation2 + $0x110] sm:$0xff]
    %v100 = vld [vmem:[#allocation2 + $0x118] sm:$0xff]
    %v101 = vld [vmem:[#allocation2 + $0x120] sm:$0xff]
    %v102 = vld [vmem:[#allocation2 + $0x128] sm:$0xff]
    %v103 = vld [vmem:[#allocation2 + $0x130] sm:$0xff]
    %v104 = vld [vmem:[#allocation2 + $0x138] sm:$0xff]
    %v105 = vld [vmem:[#allocation2 + $0x140] sm:$0xff]
    %v106 = vld [vmem:[#allocation2 + $0x148] sm:$0xff]
    %v107 = vld [vmem:[#allocation2 + $0x150] sm:$0xff]
    %v108 = vld [vmem:[#allocation2 + $0x158] sm:$0xff]
    %v109 = vld [vmem:[#allocation2 + $0x160] sm:$0xff]
    %v110 = vld [vmem:[#allocation2 + $0x168] sm:$0xff]
    %v111 = vld [vmem:[#allocation2 + $0x170] sm:$0xff]
    %v112 = vld [vmem:[#allocation2 + $0x178] sm:$0xff]
    %v113 = vld [vmem:[#allocation2 + $0x180] sm:$0xff]
    %v114 = vld [vmem:[#allocation2 + $0x188] sm:$0xff]
    %v115 = vld [vmem:[#allocation2 + $0x190] sm:$0xff]
    %v116 = vld [vmem:[#allocation2 + $0x198] sm:$0xff]
    %v117 = vld [vmem:[#allocation2 + $0x1a0] sm:$0xff]
    %v118 = vld [vmem:[#allocation2 + $0x1a8] sm:$0xff]
    %v119 = vld [vmem:[#allocation2 + $0x1b0] sm:$0xff]
    %v120 = vld [vmem:[#allocation2 + $0x1b8] sm:$0xff]
    %v121 = vld [vmem:[#allocation2 + $0x1c0] sm:$0xff]
    %v122 = vld [vmem:[#allocation2 + $0x1c8] sm:$0xff]
    %v123 = vld [vmem:[#allocation2 + $0x1d0] sm:$0xff]
    %v124 = vld [vmem:[#allocation2 + $0x1d8] sm:$0xff]
    %v125 = vld [vmem:[#allocation2 + $0x1e0] sm:$0xff]
    %v126 = vld [vmem:[#allocation2 + $0x1e8] sm:$0xff]
    %v127 = vld [vmem:[#allocation2 + $0x1f0] sm:$0xff]
    %v128 = vld [vmem:[#allocation2 + $0x1f8] sm:$0xff]
    %v129 = vld [vmem:[#allocation2 + $0x200] sm:$0xff]
    %v130 = vld [vmem:[#allocation2 + $0x208] sm:$0xff]
    %v131 = vld [vmem:[#allocation2 + $0x210] sm:$0xff]
    %v132 = vld [vmem:[#allocation2 + $0x218] sm:$0xff]
    %v133 = vld [vmem:[#allocation2 + $0x220] sm:$0xff]
    %v134 = vld [vmem:[#allocation2 + $0x228] sm:$0xff]
    %v135 = vld [vmem:[#allocation2 + $0x230] sm:$0xff]
    %v136 = vld [vmem:[#allocation2 + $0x238] sm:$0xff]
    %v137 = vld [vmem:[#allocation2 + $0x240] sm:$0xff]
    %v138 = vld [vmem:[#allocation2 + $0x248] sm:$0xff]
    %v139 = vld [vmem:[#allocation2 + $0x250] sm:$0xff]
    %v140 = vld [vmem:[#allocation2 + $0x258] sm:$0xff]
    %v141 = vld [vmem:[#allocation2 + $0x260] sm:$0xff]
    %v142 = vld [vmem:[#allocation2 + $0x268] sm:$0xff]
    %v143 = vld [vmem:[#allocation2 + $0x270] sm:$0xff]
    %v144 = vld [vmem:[#allocation2 + $0x278] sm:$0xff]
    %v145 = vld [vmem:[#allocation2 + $0x280] sm:$0xff]
    %v146 = vld [vmem:[#allocation2 + $0x288] sm:$0xff]
    %v147 = vld [vmem:[#allocation2 + $0x290] sm:$0xff]
    %v148 = vld [vmem:[#allocation2 + $0x298] sm:$0xff]
    %v149 = vld [vmem:[#allocation2 + $0x2a0] sm:$0xff]
    %v150 = vld [vmem:[#allocation2 + $0x2a8] sm:$0xff]
    %v151 = vld [vmem:[#allocation2 + $0x2b0] sm:$0xff]
    %v152 = vld [vmem:[#allocation2 + $0x2b8] sm:$0xff]
    %v153 = vld [vmem:[#allocation2 + $0x2c0] sm:$0xff]
    %v154 = vld [vmem:[#allocation2 + $0x2c8] sm:$0xff]
    %v155 = vld [vmem:[#allocation2 + $0x2d0] sm:$0xff]
    %v156 = vld [vmem:[#allocation2 + $0x2d8] sm:$0xff]
    %v157 = vld [vmem:[#allocation2 + $0x2e0] sm:$0xff]
    %v158 = vld [vmem:[#allocation2 + $0x2e8] sm:$0xff]
    %v159 = vld [vmem:[#allocation2 + $0x2f0] sm:$0xff]
    %v160 = vld [vmem:[#allocation2 + $0x2f8] sm:$0xff]
    %v161 = vld [vmem:[#allocation2 + $0x300] sm:$0xff]
    %v162 = vld [vmem:[#allocation2 + $0x308] sm:$0xff]
    %v163 = vld [vmem:[#allocation2 + $0x310] sm:$0xff]
    %v164 = vld [vmem:[#allocation2 + $0x318] sm:$0xff]
    %v165 = vld [vmem:[#allocation2 + $0x320] sm:$0xff]
    %v166 = vld [vmem:[#allocation2 + $0x328] sm:$0xff]
    %v167 = vld [vmem:[#allocation2 + $0x330] sm:$0xff]
    %v168 = vld [vmem:[#allocation2 + $0x338] sm:$0xff]
    %v169 = vld [vmem:[#allocation2 + $0x340] sm:$0xff]
    %v170 = vld [vmem:[#allocation2 + $0x348] sm:$0xff]
    %v171 = vld [vmem:[#allocation2 + $0x350] sm:$0xff]
    %v172 = vld [vmem:[#allocation2 + $0x358] sm:$0xff]
    %v173 = vld [vmem:[#allocation2 + $0x360] sm:$0xff]
    %v174 = vld [vmem:[#allocation2 + $0x368] sm:$0xff]
    %v175 = vld [vmem:[#allocation2 + $0x370] sm:$0xff]
    %v176 = vld [vmem:[#allocation2 + $0x378] sm:$0xff]
    %v177 = vld [vmem:[#allocation2 + $0x380] sm:$0xff]
    %v178 = vld [vmem:[#allocation2 + $0x388] sm:$0xff]
    %v179 = vld [vmem:[#allocation2 + $0x390] sm:$0xff]
    %v180 = vld [vmem:[#allocation2 + $0x398] sm:$0xff]
    %v181 = vld [vmem:[#allocation2 + $0x3a0] sm:$0xff]
    %v182 = vld [vmem:[#allocation2 + $0x3a8] sm:$0xff]
    %v183 = vld [vmem:[#allocation2 + $0x3b0] sm:$0xff]
    %v184 = vld [vmem:[#allocation2 + $0x3b8] sm:$0xff]
    %v185 = vld [vmem:[#allocation2 + $0x3c0] sm:$0xff]
    %v186 = vld [vmem:[#allocation2 + $0x3c8] sm:$0xff]
    %v187 = vld [vmem:[#allocation2 + $0x3d0] sm:$0xff]
    %v188 = vld [vmem:[#allocation2 + $0x3d8] sm:$0xff]
    %v189 = vld [vmem:[#allocation2 + $0x3e0] sm:$0xff]
    %v190 = vld [vmem:[#allocation2 + $0x3e8] sm:$0xff]
    %v191 = vld [vmem:[#allocation2 + $0x3f0] sm:$0xff]
    %v192 = vld [vmem:[#allocation2 + $0x3f8] sm:$0xff]
    %v193 = vld [vmem:[#allocation2 + $0x400] sm:$0xff]
    %v194 = vld [vmem:[#allocation2 + $0x408] sm:$0xff]
    %v195 = vld [vmem:[#allocation2 + $0x410] sm:$0xff]
    %v196 = vld [vmem:[#allocation2 + $0x418] sm:$0xff]
    %v197 = vld [vmem:[#allocation2 + $0x420] sm:$0xff]
    %v198 = vld [vmem:[#allocation2 + $0x428] sm:$0xff]
    %v199 = vld [vmem:[#allocation2 + $0x430] sm:$0xff]
    %v200 = vld [vmem:[#allocation2 + $0x438] sm:$0xff]
    %v201 = vld [vmem:[#allocation2 + $0x440] sm:$0xff]
    %v202 = vld [vmem:[#allocation2 + $0x448] sm:$0xff]
    %v203 = vld [vmem:[#allocation2 + $0x450] sm:$0xff]
    %v204 = vld [vmem:[#allocation2 + $0x458] sm:$0xff]
    %v205 = vld [vmem:[#allocation2 + $0x460] sm:$0xff]
    %v206 = vld [vmem:[#allocation2 + $0x468] sm:$0xff]
    %v207 = vld [vmem:[#allocation2 + $0x470] sm:$0xff]
    %v208 = vld [vmem:[#allocation2 + $0x478] sm:$0xff]
    %v209 = vld [vmem:[#allocation2 + $0x480] sm:$0xff]
    %v210 = vld [vmem:[#allocation2 + $0x488] sm:$0xff]
    %v211 = vld [vmem:[#allocation2 + $0x490] sm:$0xff]
    %v212 = vld [vmem:[#allocation2 + $0x498] sm:$0xff]
    %v213 = vld [vmem:[#allocation2 + $0x4a0] sm:$0xff]
    %v214 = vld [vmem:[#allocation2 + $0x4a8] sm:$0xff]
    %v215 = vld [vmem:[#allocation2 + $0x4b0] sm:$0xff]
    %v216 = vld [vmem:[#allocation2 + $0x4b8] sm:$0xff]
    %v217 = vld [vmem:[#allocation2 + $0x4c0] sm:$0xff]
    %v218 = vld [vmem:[#allocation2 + $0x4c8] sm:$0xff]
    %v219 = vld [vmem:[#allocation2 + $0x4d0] sm:$0xff]
    %v220 = vld [vmem:[#allocation2 + $0x4d8] sm:$0xff]
    %v221 = vld [vmem:[#allocation2 + $0x4e0] sm:$0xff]
    %v222 = vld [vmem:[#allocation2 + $0x4e8] sm:$0xff]
    %v223 = vld [vmem:[#allocation2 + $0x4f0] sm:$0xff]
    %v224 = vld [vmem:[#allocation2 + $0x4f8] sm:$0xff]
    %v225 = vld [vmem:[#allocation2 + $0x500] sm:$0xff]
    %v226 = vld [vmem:[#allocation2 + $0x508] sm:$0xff]
    %v227 = vld [vmem:[#allocation2 + $0x510] sm:$0xff]
    %v228 = vld [vmem:[#allocation2 + $0x518] sm:$0xff]
    %v229 = vld [vmem:[#allocation2 + $0x520] sm:$0xff]
    %v230 = vld [vmem:[#allocation2 + $0x528] sm:$0xff]
    %v231 = vld [vmem:[#allocation2 + $0x530] sm:$0xff]
    %v232 = vld [vmem:[#allocation2 + $0x538] sm:$0xff]
    %v233 = vld [vmem:[#allocation2 + $0x540] sm:$0xff]
    %v234 = vld [vmem:[#allocation2 + $0x548] sm:$0xff]
    %v235 = vld [vmem:[#allocation2 + $0x550] sm:$0xff]
    %v236 = vld [vmem:[#allocation2 + $0x558] sm:$0xff]
    %v237 = vld [vmem:[#allocation2 + $0x560] sm:$0xff]
    %v238 = vld [vmem:[#allocation2 + $0x568] sm:$0xff]
    %v239 = vld [vmem:[#allocation2 + $0x570] sm:$0xff]
    %v240 = vld [vmem:[#allocation2 + $0x578] sm:$0xff]
    %v241 = vld [vmem:[#allocation2 + $0x580] sm:$0xff]
    %v242 = vld [vmem:[#allocation2 + $0x588] sm:$0xff]
    %v243 = vld [vmem:[#allocation2 + $0x590] sm:$0xff]
    %v244 = vld [vmem:[#allocation2 + $0x598] sm:$0xff]
    %v245 = vld [vmem:[#allocation2 + $0x5a0] sm:$0xff]
    %v246 = vld [vmem:[#allocation2 + $0x5a8] sm:$0xff]
    %v247 = vld [vmem:[#allocation2 + $0x5b0] sm:$0xff]
    %v248 = vld [vmem:[#allocation2 + $0x5b8] sm:$0xff]
    %v249 = vld [vmem:[#allocation2 + $0x5c0] sm:$0xff]
    %v250 = vld [vmem:[#allocation2 + $0x5c8] sm:$0xff]
    %v251 = vld [vmem:[#allocation2 + $0x5d0] sm:$0xff]
    %v252 = vld [vmem:[#allocation2 + $0x5d8] sm:$0xff]
    %v253 = vld [vmem:[#allocation2 + $0x5e0] sm:$0xff]
    %v254 = vld [vmem:[#allocation2 + $0x5e8] sm:$0xff]
    %v255 = vld [vmem:[#allocation2 + $0x5f0] sm:$0xff]
    %v256 = vld [vmem:[#allocation2 + $0x5f8] sm:$0xff]
    %v257 = vld [vmem:[#allocation2 + $0x600] sm:$0xff]
    %v258 = vld [vmem:[#allocation2 + $0x608] sm:$0xff]
    %v259 = vld [vmem:[#allocation2 + $0x610] sm:$0xff]
    %v260 = vld [vmem:[#allocation2 + $0x618] sm:$0xff]
    %v261 = vld [vmem:[#allocation2 + $0x620] sm:$0xff]
    %v262 = vld [vmem:[#allocation2 + $0x628] sm:$0xff]
    %v263 = vld [vmem:[#allocation2 + $0x630] sm:$0xff]
    %v264 = vld [vmem:[#allocation2 + $0x638] sm:$0xff]
    %v265 = vld [vmem:[#allocation2 + $0x640] sm:$0xff]
    %v266 = vld [vmem:[#allocation2 + $0x648] sm:$0xff]
    %v267 = vld [vmem:[#allocation2 + $0x650] sm:$0xff]
    %v268 = vld [vmem:[#allocation2 + $0x658] sm:$0xff]
    %v269 = vld [vmem:[#allocation2 + $0x660] sm:$0xff]
    %v270 = vld [vmem:[#allocation2 + $0x668] sm:$0xff]
    %v271 = vld [vmem:[#allocation2 + $0x670] sm:$0xff]
    %v272 = vld [vmem:[#allocation2 + $0x678] sm:$0xff]
    %v273 = vld [vmem:[#allocation2 + $0x680] sm:$0xff]
    %v274 = vld [vmem:[#allocation2 + $0x688] sm:$0xff]
    %v275 = vld [vmem:[#allocation2 + $0x690] sm:$0xff]
    %v276 = vld [vmem:[#allocation2 + $0x698] sm:$0xff]
    %v277 = vld [vmem:[#allocation2 + $0x6a0] sm:$0xff]
    %v278 = vld [vmem:[#allocation2 + $0x6a8] sm:$0xff]
    %v279 = vld [vmem:[#allocation2 + $0x6b0] sm:$0xff]
    %v280 = vld [vmem:[#allocation2 + $0x6b8] sm:$0xff]
    %v281 = vld [vmem:[#allocation2 + $0x6c0] sm:$0xff]
    %v282 = vld [vmem:[#allocation2 + $0x6c8] sm:$0xff]
    %v283 = vld [vmem:[#allocation2 + $0x6d0] sm:$0xff]
    %v284 = vld [vmem:[#allocation2 + $0x6d8] sm:$0xff]
    %v285 = vld [vmem:[#allocation2 + $0x6e0] sm:$0xff]
    %v286 = vld [vmem:[#allocation2 + $0x6e8] sm:$0xff]
    %v287 = vld [vmem:[#allocation2 + $0x6f0] sm:$0xff]
    %v288 = vld [vmem:[#allocation2 + $0x6f8] sm:$0xff]
    %v289 = vld [vmem:[#allocation2 + $0x700] sm:$0xff]
    %v290 = vld [vmem:[#allocation2 + $0x708] sm:$0xff]
    %v291 = vld [vmem:[#allocation2 + $0x710] sm:$0xff]
    %v292 = vld [vmem:[#allocation2 + $0x718] sm:$0xff]
    %v293 = vld [vmem:[#allocation2 + $0x720] sm:$0xff]
    %v294 = vld [vmem:[#allocation2 + $0x728] sm:$0xff]
    %v295 = vld [vmem:[#allocation2 + $0x730] sm:$0xff]
    %v296 = vld [vmem:[#allocation2 + $0x738] sm:$0xff]
    %v297 = vld [vmem:[#allocation2 + $0x740] sm:$0xff]
    %v298 = vld [vmem:[#allocation2 + $0x748] sm:$0xff]
    %v299 = vld [vmem:[#allocation2 + $0x750] sm:$0xff]
    %v300 = vld [vmem:[#allocation2 + $0x758] sm:$0xff]
    %v301 = vld [vmem:[#allocation2 + $0x760] sm:$0xff]
    %v302 = vld [vmem:[#allocation2 + $0x768] sm:$0xff]
    %v303 = vld [vmem:[#allocation2 + $0x770] sm:$0xff]
    %v304 = vld [vmem:[#allocation2 + $0x778] sm:$0xff]
    %v305 = vld [vmem:[#allocation2 + $0x780] sm:$0xff]
    %v306 = vld [vmem:[#allocation2 + $0x788] sm:$0xff]
    %v307 = vld [vmem:[#allocation2 + $0x790] sm:$0xff]
    %v308 = vld [vmem:[#allocation2 + $0x798] sm:$0xff]
    %v309 = vld [vmem:[#allocation2 + $0x7a0] sm:$0xff]
    %v310 = vld [vmem:[#allocation2 + $0x7a8] sm:$0xff]
    %v311 = vld [vmem:[#allocation2 + $0x7b0] sm:$0xff]
    %v312 = vld [vmem:[#allocation2 + $0x7b8] sm:$0xff]
    %v313 = vld [vmem:[#allocation2 + $0x7c0] sm:$0xff]
    %v314 = vld [vmem:[#allocation2 + $0x7c8] sm:$0xff]
    %v315 = vld [vmem:[#allocation2 + $0x7d0] sm:$0xff]
    %v316 = vld [vmem:[#allocation2 + $0x7d8] sm:$0xff]
    %v317 = vld [vmem:[#allocation2 + $0x7e0] sm:$0xff]
    %v318 = vld [vmem:[#allocation2 + $0x7e8] sm:$0xff]
    %v319 = vld [vmem:[#allocation2 + $0x7f0] sm:$0xff]
    %v320 = vld [vmem:[#allocation2 + $0x7f8] sm:$0xff]
    %v577 = vunpack.c.l.b16 %v65
    %v578 = vunpack.c.h.b16 %v65
    %v579 = vunpack.c.l.b16 %v66
    %v580 = vunpack.c.h.b16 %v66
    %v581 = vunpack.c.l.b16 %v67
    %v582 = vunpack.c.h.b16 %v67
    %v583 = vunpack.c.l.b16 %v68
    %v584 = vunpack.c.h.b16 %v68
    %v585 = vunpack.c.l.b16 %v69
    %v586 = vunpack.c.h.b16 %v69
    %v587 = vunpack.c.l.b16 %v70
    %v588 = vunpack.c.h.b16 %v70
    %v589 = vunpack.c.l.b16 %v71
    %v590 = vunpack.c.h.b16 %v71
    %v591 = vunpack.c.l.b16 %v72
    %v592 = vunpack.c.h.b16 %v72
    %v593 = vunpack.c.l.b16 %v73
    %v594 = vunpack.c.h.b16 %v73
    %v595 = vunpack.c.l.b16 %v74
    %v596 = vunpack.c.h.b16 %v74
    %v597 = vunpack.c.l.b16 %v75
    %v598 = vunpack.c.h.b16 %v75
    %v599 = vunpack.c.l.b16 %v76
    %v600 = vunpack.c.h.b16 %v76
    %v601 = vunpack.c.l.b16 %v77
    %v602 = vunpack.c.h.b16 %v77
    %v603 = vunpack.c.l.b16 %v78
    %v604 = vunpack.c.h.b16 %v78
    %v605 = vunpack.c.l.b16 %v79
    %v606 = vunpack.c.h.b16 %v79
    %v607 = vunpack.c.l.b16 %v80
    %v608 = vunpack.c.h.b16 %v80
    %v609 = vunpack.c.l.b16 %v81
    %v610 = vunpack.c.h.b16 %v81
    %v611 = vunpack.c.l.b16 %v82
    %v612 = vunpack.c.h.b16 %v82
    %v613 = vunpack.c.l.b16 %v83
    %v614 = vunpack.c.h.b16 %v83
    %v615 = vunpack.c.l.b16 %v84
    %v616 = vunpack.c.h.b16 %v84
    %v617 = vunpack.c.l.b16 %v85
    %v618 = vunpack.c.h.b16 %v85
    %v619 = vunpack.c.l.b16 %v86
    %v620 = vunpack.c.h.b16 %v86
    %v621 = vunpack.c.l.b16 %v87
    %v622 = vunpack.c.h.b16 %v87
    %v623 = vunpack.c.l.b16 %v88
    %v624 = vunpack.c.h.b16 %v88
    %v625 = vunpack.c.l.b16 %v89
    %v626 = vunpack.c.h.b16 %v89
    %v627 = vunpack.c.l.b16 %v90
    %v628 = vunpack.c.h.b16 %v90
    %v629 = vunpack.c.l.b16 %v91
    %v630 = vunpack.c.h.b16 %v91
    %v631 = vunpack.c.l.b16 %v92
    %v632 = vunpack.c.h.b16 %v92
    %v633 = vunpack.c.l.b16 %v93
    %v634 = vunpack.c.h.b16 %v93
    %v635 = vunpack.c.l.b16 %v94
    %v636 = vunpack.c.h.b16 %v94
    %v637 = vunpack.c.l.b16 %v95
    %v638 = vunpack.c.h.b16 %v95
    %v639 = vunpack.c.l.b16 %v96
    %v640 = vunpack.c.h.b16 %v96
    %v641 = vunpack.c.l.b16 %v97
    %v642 = vunpack.c.h.b16 %v97
    %v643 = vunpack.c.l.b16 %v98
    %v644 = vunpack.c.h.b16 %v98
    %v645 = vunpack.c.l.b16 %v99
    %v646 = vunpack.c.h.b16 %v99
    %v647 = vunpack.c.l.b16 %v100
    %v648 = vunpack.c.h.b16 %v100
    %v649 = vunpack.c.l.b16 %v101
    %v650 = vunpack.c.h.b16 %v101
    %v651 = vunpack.c.l.b16 %v102
    %v652 = vunpack.c.h.b16 %v102
    %v653 = vunpack.c.l.b16 %v103
    %v654 = vunpack.c.h.b16 %v103
    %v655 = vunpack.c.l.b16 %v104
    %v656 = vunpack.c.h.b16 %v104
    %v657 = vunpack.c.l.b16 %v105
    %v658 = vunpack.c.h.b16 %v105
    %v659 = vunpack.c.l.b16 %v106
    %v660 = vunpack.c.h.b16 %v106
    %v661 = vunpack.c.l.b16 %v107
    %v662 = vunpack.c.h.b16 %v107
    %v663 = vunpack.c.l.b16 %v108
    %v664 = vunpack.c.h.b16 %v108
    %v665 = vunpack.c.l.b16 %v109
    %v666 = vunpack.c.h.b16 %v109
    %v667 = vunpack.c.l.b16 %v110
    %v668 = vunpack.c.h.b16 %v110
    %v669 = vunpack.c.l.b16 %v111
    %v670 = vunpack.c.h.b16 %v111
    %v671 = vunpack.c.l.b16 %v112
    %v672 = vunpack.c.h.b16 %v112
    %v673 = vunpack.c.l.b16 %v113
    %v674 = vunpack.c.h.b16 %v113
    %v675 = vunpack.c.l.b16 %v114
    %v676 = vunpack.c.h.b16 %v114
    %v677 = vunpack.c.l.b16 %v115
    %v678 = vunpack.c.h.b16 %v115
    %v679 = vunpack.c.l.b16 %v116
    %v680 = vunpack.c.h.b16 %v116
    %v681 = vunpack.c.l.b16 %v117
    %v682 = vunpack.c.h.b16 %v117
    %v683 = vunpack.c.l.b16 %v118
    %v684 = vunpack.c.h.b16 %v118
    %v685 = vunpack.c.l.b16 %v119
    %v686 = vunpack.c.h.b16 %v119
    %v687 = vunpack.c.l.b16 %v120
    %v688 = vunpack.c.h.b16 %v120
    %v689 = vunpack.c.l.b16 %v121
    %v690 = vunpack.c.h.b16 %v121
    %v691 = vunpack.c.l.b16 %v122
    %v692 = vunpack.c.h.b16 %v122
    %v693 = vunpack.c.l.b16 %v123
    %v694 = vunpack.c.h.b16 %v123
    %v695 = vunpack.c.l.b16 %v124
    %v696 = vunpack.c.h.b16 %v124
    %v697 = vunpack.c.l.b16 %v125
    %v698 = vunpack.c.h.b16 %v125
    %v699 = vunpack.c.l.b16 %v126
    %v700 = vunpack.c.h.b16 %v126
    %v701 = vunpack.c.l.b16 %v127
    %v702 = vunpack.c.h.b16 %v127
    %v703 = vunpack.c.l.b16 %v128
    %v704 = vunpack.c.h.b16 %v128
    %v705 = vunpack.c.l.b16 %v129
    %v706 = vunpack.c.h.b16 %v129
    %v707 = vunpack.c.l.b16 %v130
    %v708 = vunpack.c.h.b16 %v130
    %v709 = vunpack.c.l.b16 %v131
    %v710 = vunpack.c.h.b16 %v131
    %v711 = vunpack.c.l.b16 %v132
    %v712 = vunpack.c.h.b16 %v132
    %v713 = vunpack.c.l.b16 %v133
    %v714 = vunpack.c.h.b16 %v133
    %v715 = vunpack.c.l.b16 %v134
    %v716 = vunpack.c.h.b16 %v134
    %v717 = vunpack.c.l.b16 %v135
    %v718 = vunpack.c.h.b16 %v135
    %v719 = vunpack.c.l.b16 %v136
    %v720 = vunpack.c.h.b16 %v136
    %v721 = vunpack.c.l.b16 %v137
    %v722 = vunpack.c.h.b16 %v137
    %v723 = vunpack.c.l.b16 %v138
    %v724 = vunpack.c.h.b16 %v138
    %v725 = vunpack.c.l.b16 %v139
    %v726 = vunpack.c.h.b16 %v139
    %v727 = vunpack.c.l.b16 %v140
    %v728 = vunpack.c.h.b16 %v140
    %v729 = vunpack.c.l.b16 %v141
    %v730 = vunpack.c.h.b16 %v141
    %v731 = vunpack.c.l.b16 %v142
    %v732 = vunpack.c.h.b16 %v142
    %v733 = vunpack.c.l.b16 %v143
    %v734 = vunpack.c.h.b16 %v143
    %v735 = vunpack.c.l.b16 %v144
    %v736 = vunpack.c.h.b16 %v144
    %v737 = vunpack.c.l.b16 %v145
    %v738 = vunpack.c.h.b16 %v145
    %v739 = vunpack.c.l.b16 %v146
    %v740 = vunpack.c.h.b16 %v146
    %v741 = vunpack.c.l.b16 %v147
    %v742 = vunpack.c.h.b16 %v147
    %v743 = vunpack.c.l.b16 %v148
    %v744 = vunpack.c.h.b16 %v148
    %v745 = vunpack.c.l.b16 %v149
    %v746 = vunpack.c.h.b16 %v149
    %v747 = vunpack.c.l.b16 %v150
    %v748 = vunpack.c.h.b16 %v150
    %v749 = vunpack.c.l.b16 %v151
    %v750 = vunpack.c.h.b16 %v151
    %v751 = vunpack.c.l.b16 %v152
    %v752 = vunpack.c.h.b16 %v152
    %v753 = vunpack.c.l.b16 %v153
    %v754 = vunpack.c.h.b16 %v153
    %v755 = vunpack.c.l.b16 %v154
    %v756 = vunpack.c.h.b16 %v154
    %v757 = vunpack.c.l.b16 %v155
    %v758 = vunpack.c.h.b16 %v155
    %v759 = vunpack.c.l.b16 %v156
    %v760 = vunpack.c.h.b16 %v156
    %v761 = vunpack.c.l.b16 %v157
    %v762 = vunpack.c.h.b16 %v157
    %v763 = vunpack.c.l.b16 %v158
    %v764 = vunpack.c.h.b16 %v158
    %v765 = vunpack.c.l.b16 %v159
    %v766 = vunpack.c.h.b16 %v159
    %v767 = vunpack.c.l.b16 %v160
    %v768 = vunpack.c.h.b16 %v160
    %v769 = vunpack.c.l.b16 %v161
    %v770 = vunpack.c.h.b16 %v161
    %v771 = vunpack.c.l.b16 %v162
    %v772 = vunpack.c.h.b16 %v162
    %v773 = vunpack.c.l.b16 %v163
    %v774 = vunpack.c.h.b16 %v163
    %v775 = vunpack.c.l.b16 %v164
    %v776 = vunpack.c.h.b16 %v164
    %v777 = vunpack.c.l.b16 %v165
    %v778 = vunpack.c.h.b16 %v165
    %v779 = vunpack.c.l.b16 %v166
    %v780 = vunpack.c.h.b16 %v166
    %v781 = vunpack.c.l.b16 %v167
    %v782 = vunpack.c.h.b16 %v167
    %v783 = vunpack.c.l.b16 %v168
    %v784 = vunpack.c.h.b16 %v168
    %v785 = vunpack.c.l.b16 %v169
    %v786 = vunpack.c.h.b16 %v169
    %v787 = vunpack.c.l.b16 %v170
    %v788 = vunpack.c.h.b16 %v170
    %v789 = vunpack.c.l.b16 %v171
    %v790 = vunpack.c.h.b16 %v171
    %v791 = vunpack.c.l.b16 %v172
    %v792 = vunpack.c.h.b16 %v172
    %v793 = vunpack.c.l.b16 %v173
    %v794 = vunpack.c.h.b16 %v173
    %v795 = vunpack.c.l.b16 %v174
    %v796 = vunpack.c.h.b16 %v174
    %v797 = vunpack.c.l.b16 %v175
    %v798 = vunpack.c.h.b16 %v175
    %v799 = vunpack.c.l.b16 %v176
    %v800 = vunpack.c.h.b16 %v176
    %v801 = vunpack.c.l.b16 %v177
    %v802 = vunpack.c.h.b16 %v177
    %v803 = vunpack.c.l.b16 %v178
    %v804 = vunpack.c.h.b16 %v178
    %v805 = vunpack.c.l.b16 %v179
    %v806 = vunpack.c.h.b16 %v179
    %v807 = vunpack.c.l.b16 %v180
    %v808 = vunpack.c.h.b16 %v180
    %v809 = vunpack.c.l.b16 %v181
    %v810 = vunpack.c.h.b16 %v181
    %v811 = vunpack.c.l.b16 %v182
    %v812 = vunpack.c.h.b16 %v182
    %v813 = vunpack.c.l.b16 %v183
    %v814 = vunpack.c.h.b16 %v183
    %v815 = vunpack.c.l.b16 %v184
    %v816 = vunpack.c.h.b16 %v184
    %v817 = vunpack.c.l.b16 %v185
    %v818 = vunpack.c.h.b16 %v185
    %v819 = vunpack.c.l.b16 %v186
    %v820 = vunpack.c.h.b16 %v186
    %v821 = vunpack.c.l.b16 %v187
    %v822 = vunpack.c.h.b16 %v187
    %v823 = vunpack.c.l.b16 %v188
    %v824 = vunpack.c.h.b16 %v188
    %v825 = vunpack.c.l.b16 %v189
    %v826 = vunpack.c.h.b16 %v189
    %v827 = vunpack.c.l.b16 %v190
    %v828 = vunpack.c.h.b16 %v190
    %v829 = vunpack.c.l.b16 %v191
    %v830 = vunpack.c.h.b16 %v191
    %v831 = vunpack.c.l.b16 %v192
    %v832 = vunpack.c.h.b16 %v192
    %v833 = vunpack.c.l.b16 %v193
    %v834 = vunpack.c.h.b16 %v193
    %v835 = vunpack.c.l.b16 %v194
    %v836 = vunpack.c.h.b16 %v194
    %v837 = vunpack.c.l.b16 %v195
    %v838 = vunpack.c.h.b16 %v195
    %v839 = vunpack.c.l.b16 %v196
    %v840 = vunpack.c.h.b16 %v196
    %v841 = vunpack.c.l.b16 %v197
    %v842 = vunpack.c.h.b16 %v197
    %v843 = vunpack.c.l.b16 %v198
    %v844 = vunpack.c.h.b16 %v198
    %v845 = vunpack.c.l.b16 %v199
    %v846 = vunpack.c.h.b16 %v199
    %v847 = vunpack.c.l.b16 %v200
    %v848 = vunpack.c.h.b16 %v200
    %v849 = vunpack.c.l.b16 %v201
    %v850 = vunpack.c.h.b16 %v201
    %v851 = vunpack.c.l.b16 %v202
    %v852 = vunpack.c.h.b16 %v202
    %v853 = vunpack.c.l.b16 %v203
    %v854 = vunpack.c.h.b16 %v203
    %v855 = vunpack.c.l.b16 %v204
    %v856 = vunpack.c.h.b16 %v204
    %v857 = vunpack.c.l.b16 %v205
    %v858 = vunpack.c.h.b16 %v205
    %v859 = vunpack.c.l.b16 %v206
    %v860 = vunpack.c.h.b16 %v206
    %v861 = vunpack.c.l.b16 %v207
    %v862 = vunpack.c.h.b16 %v207
    %v863 = vunpack.c.l.b16 %v208
    %v864 = vunpack.c.h.b16 %v208
    %v865 = vunpack.c.l.b16 %v209
    %v866 = vunpack.c.h.b16 %v209
    %v867 = vunpack.c.l.b16 %v210
    %v868 = vunpack.c.h.b16 %v210
    %v869 = vunpack.c.l.b16 %v211
    %v870 = vunpack.c.h.b16 %v211
    %v871 = vunpack.c.l.b16 %v212
    %v872 = vunpack.c.h.b16 %v212
    %v873 = vunpack.c.l.b16 %v213
    %v874 = vunpack.c.h.b16 %v213
    %v875 = vunpack.c.l.b16 %v214
    %v876 = vunpack.c.h.b16 %v214
    %v877 = vunpack.c.l.b16 %v215
    %v878 = vunpack.c.h.b16 %v215
    %v879 = vunpack.c.l.b16 %v216
    %v880 = vunpack.c.h.b16 %v216
    %v881 = vunpack.c.l.b16 %v217
    %v882 = vunpack.c.h.b16 %v217
    %v883 = vunpack.c.l.b16 %v218
    %v884 = vunpack.c.h.b16 %v218
    %v885 = vunpack.c.l.b16 %v219
    %v886 = vunpack.c.h.b16 %v219
    %v887 = vunpack.c.l.b16 %v220
    %v888 = vunpack.c.h.b16 %v220
    %v889 = vunpack.c.l.b16 %v221
    %v890 = vunpack.c.h.b16 %v221
    %v891 = vunpack.c.l.b16 %v222
    %v892 = vunpack.c.h.b16 %v222
    %v893 = vunpack.c.l.b16 %v223
    %v894 = vunpack.c.h.b16 %v223
    %v895 = vunpack.c.l.b16 %v224
    %v896 = vunpack.c.h.b16 %v224
    %v897 = vunpack.c.l.b16 %v225
    %v898 = vunpack.c.h.b16 %v225
    %v899 = vunpack.c.l.b16 %v226
    %v900 = vunpack.c.h.b16 %v226
    %v901 = vunpack.c.l.b16 %v227
    %v902 = vunpack.c.h.b16 %v227
    %v903 = vunpack.c.l.b16 %v228
    %v904 = vunpack.c.h.b16 %v228
    %v905 = vunpack.c.l.b16 %v229
    %v906 = vunpack.c.h.b16 %v229
    %v907 = vunpack.c.l.b16 %v230
    %v908 = vunpack.c.h.b16 %v230
    %v909 = vunpack.c.l.b16 %v231
    %v910 = vunpack.c.h.b16 %v231
    %v911 = vunpack.c.l.b16 %v232
    %v912 = vunpack.c.h.b16 %v232
    %v913 = vunpack.c.l.b16 %v233
    %v914 = vunpack.c.h.b16 %v233
    %v915 = vunpack.c.l.b16 %v234
    %v916 = vunpack.c.h.b16 %v234
    %v917 = vunpack.c.l.b16 %v235
    %v918 = vunpack.c.h.b16 %v235
    %v919 = vunpack.c.l.b16 %v236
    %v920 = vunpack.c.h.b16 %v236
    %v921 = vunpack.c.l.b16 %v237
    %v922 = vunpack.c.h.b16 %v237
    %v923 = vunpack.c.l.b16 %v238
    %v924 = vunpack.c.h.b16 %v238
    %v925 = vunpack.c.l.b16 %v239
    %v926 = vunpack.c.h.b16 %v239
    %v927 = vunpack.c.l.b16 %v240
    %v928 = vunpack.c.h.b16 %v240
    %v929 = vunpack.c.l.b16 %v241
    %v930 = vunpack.c.h.b16 %v241
    %v931 = vunpack.c.l.b16 %v242
    %v932 = vunpack.c.h.b16 %v242
    %v933 = vunpack.c.l.b16 %v243
    %v934 = vunpack.c.h.b16 %v243
    %v935 = vunpack.c.l.b16 %v244
    %v936 = vunpack.c.h.b16 %v244
    %v937 = vunpack.c.l.b16 %v245
    %v938 = vunpack.c.h.b16 %v245
    %v939 = vunpack.c.l.b16 %v246
    %v940 = vunpack.c.h.b16 %v246
    %v941 = vunpack.c.l.b16 %v247
    %v942 = vunpack.c.h.b16 %v247
    %v943 = vunpack.c.l.b16 %v248
    %v944 = vunpack.c.h.b16 %v248
    %v945 = vunpack.c.l.b16 %v249
    %v946 = vunpack.c.h.b16 %v249
    %v947 = vunpack.c.l.b16 %v250
    %v948 = vunpack.c.h.b16 %v250
    %v949 = vunpack.c.l.b16 %v251
    %v950 = vunpack.c.h.b16 %v251
    %v951 = vunpack.c.l.b16 %v252
    %v952 = vunpack.c.h.b16 %v252
    %v953 = vunpack.c.l.b16 %v253
    %v954 = vunpack.c.h.b16 %v253
    %v955 = vunpack.c.l.b16 %v254
    %v956 = vunpack.c.h.b16 %v254
    %v957 = vunpack.c.l.b16 %v255
    %v958 = vunpack.c.h.b16 %v255
    %v959 = vunpack.c.l.b16 %v256
    %v960 = vunpack.c.h.b16 %v256
    %v961 = vunpack.c.l.b16 %v257
    %v962 = vunpack.c.h.b16 %v257
    %v963 = vunpack.c.l.b16 %v258
    %v964 = vunpack.c.h.b16 %v258
    %v965 = vunpack.c.l.b16 %v259
    %v966 = vunpack.c.h.b16 %v259
    %v967 = vunpack.c.l.b16 %v260
    %v968 = vunpack.c.h.b16 %v260
    %v969 = vunpack.c.l.b16 %v261
    %v970 = vunpack.c.h.b16 %v261
    %v971 = vunpack.c.l.b16 %v262
    %v972 = vunpack.c.h.b16 %v262
    %v973 = vunpack.c.l.b16 %v263
    %v974 = vunpack.c.h.b16 %v263
    %v975 = vunpack.c.l.b16 %v264
    %v976 = vunpack.c.h.b16 %v264
    %v977 = vunpack.c.l.b16 %v265
    %v978 = vunpack.c.h.b16 %v265
    %v979 = vunpack.c.l.b16 %v266
    %v980 = vunpack.c.h.b16 %v266
    %v981 = vunpack.c.l.b16 %v267
    %v982 = vunpack.c.h.b16 %v267
    %v983 = vunpack.c.l.b16 %v268
    %v984 = vunpack.c.h.b16 %v268
    %v985 = vunpack.c.l.b16 %v269
    %v986 = vunpack.c.h.b16 %v269
    %v987 = vunpack.c.l.b16 %v270
    %v988 = vunpack.c.h.b16 %v270
    %v989 = vunpack.c.l.b16 %v271
    %v990 = vunpack.c.h.b16 %v271
    %v991 = vunpack.c.l.b16 %v272
    %v992 = vunpack.c.h.b16 %v272
    %v993 = vunpack.c.l.b16 %v273
    %v994 = vunpack.c.h.b16 %v273
    %v995 = vunpack.c.l.b16 %v274
    %v996 = vunpack.c.h.b16 %v274
    %v997 = vunpack.c.l.b16 %v275
    %v998 = vunpack.c.h.b16 %v275
    %v999 = vunpack.c.l.b16 %v276
    %v1000 = vunpack.c.h.b16 %v276
    %v1001 = vunpack.c.l.b16 %v277
    %v1002 = vunpack.c.h.b16 %v277
    %v1003 = vunpack.c.l.b16 %v278
    %v1004 = vunpack.c.h.b16 %v278
    %v1005 = vunpack.c.l.b16 %v279
    %v1006 = vunpack.c.h.b16 %v279
    %v1007 = vunpack.c.l.b16 %v280
    %v1008 = vunpack.c.h.b16 %v280
    %v1009 = vunpack.c.l.b16 %v281
    %v1010 = vunpack.c.h.b16 %v281
    %v1011 = vunpack.c.l.b16 %v282
    %v1012 = vunpack.c.h.b16 %v282
    %v1013 = vunpack.c.l.b16 %v283
    %v1014 = vunpack.c.h.b16 %v283
    %v1015 = vunpack.c.l.b16 %v284
    %v1016 = vunpack.c.h.b16 %v284
    %v1017 = vunpack.c.l.b16 %v285
    %v1018 = vunpack.c.h.b16 %v285
    %v1019 = vunpack.c.l.b16 %v286
    %v1020 = vunpack.c.h.b16 %v286
    %v1021 = vunpack.c.l.b16 %v287
    %v1022 = vunpack.c.h.b16 %v287
    %v1023 = vunpack.c.l.b16 %v288
    %v1024 = vunpack.c.h.b16 %v288
    %v1025 = vunpack.c.l.b16 %v289
    %v1026 = vunpack.c.h.b16 %v289
    %v1027 = vunpack.c.l.b16 %v290
    %v1028 = vunpack.c.h.b16 %v290
    %v1029 = vunpack.c.l.b16 %v291
    %v1030 = vunpack.c.h.b16 %v291
    %v1031 = vunpack.c.l.b16 %v292
    %v1032 = vunpack.c.h.b16 %v292
    %v1033 = vunpack.c.l.b16 %v293
    %v1034 = vunpack.c.h.b16 %v293
    %v1035 = vunpack.c.l.b16 %v294
    %v1036 = vunpack.c.h.b16 %v294
    %v1037 = vunpack.c.l.b16 %v295
    %v1038 = vunpack.c.h.b16 %v295
    %v1039 = vunpack.c.l.b16 %v296
    %v1040 = vunpack.c.h.b16 %v296
    %v1041 = vunpack.c.l.b16 %v297
    %v1042 = vunpack.c.h.b16 %v297
    %v1043 = vunpack.c.l.b16 %v298
    %v1044 = vunpack.c.h.b16 %v298
    %v1045 = vunpack.c.l.b16 %v299
    %v1046 = vunpack.c.h.b16 %v299
    %v1047 = vunpack.c.l.b16 %v300
    %v1048 = vunpack.c.h.b16 %v300
    %v1049 = vunpack.c.l.b16 %v301
    %v1050 = vunpack.c.h.b16 %v301
    %v1051 = vunpack.c.l.b16 %v302
    %v1052 = vunpack.c.h.b16 %v302
    %v1053 = vunpack.c.l.b16 %v303
    %v1054 = vunpack.c.h.b16 %v303
    %v1055 = vunpack.c.l.b16 %v304
    %v1056 = vunpack.c.h.b16 %v304
    %v1057 = vunpack.c.l.b16 %v305
    %v1058 = vunpack.c.h.b16 %v305
    %v1059 = vunpack.c.l.b16 %v306
    %v1060 = vunpack.c.h.b16 %v306
    %v1061 = vunpack.c.l.b16 %v307
    %v1062 = vunpack.c.h.b16 %v307
    %v1063 = vunpack.c.l.b16 %v308
    %v1064 = vunpack.c.h.b16 %v308
    %v1065 = vunpack.c.l.b16 %v309
    %v1066 = vunpack.c.h.b16 %v309
    %v1067 = vunpack.c.l.b16 %v310
    %v1068 = vunpack.c.h.b16 %v310
    %v1069 = vunpack.c.l.b16 %v311
    %v1070 = vunpack.c.h.b16 %v311
    %v1071 = vunpack.c.l.b16 %v312
    %v1072 = vunpack.c.h.b16 %v312
    %v1073 = vunpack.c.l.b16 %v313
    %v1074 = vunpack.c.h.b16 %v313
    %v1075 = vunpack.c.l.b16 %v314
    %v1076 = vunpack.c.h.b16 %v314
    %v1077 = vunpack.c.l.b16 %v315
    %v1078 = vunpack.c.h.b16 %v315
    %v1079 = vunpack.c.l.b16 %v316
    %v1080 = vunpack.c.h.b16 %v316
    %v1081 = vunpack.c.l.b16 %v317
    %v1082 = vunpack.c.h.b16 %v317
    %v1083 = vunpack.c.l.b16 %v318
    %v1084 = vunpack.c.h.b16 %v318
    %v1085 = vunpack.c.l.b16 %v319
    %v1086 = vunpack.c.h.b16 %v319
    %v1087 = vunpack.c.l.b16 %v320
    %v1088 = vunpack.c.h.b16 %v320
    %v1089 = vpack.c.b16 %v581, %v577
    %v1090 = vpack.c.b16 %v582, %v578
    %v1091 = vpack.c.b16 %v583, %v579
    %v1092 = vpack.c.b16 %v584, %v580
    %v1093 = vpack.c.b16 %v589, %v585
    %v1094 = vpack.c.b16 %v590, %v586
    %v1095 = vpack.c.b16 %v591, %v587
    %v1096 = vpack.c.b16 %v592, %v588
    %v1097 = vpack.c.b16 %v597, %v593
    %v1098 = vpack.c.b16 %v598, %v594
    %v1099 = vpack.c.b16 %v599, %v595
    %v1100 = vpack.c.b16 %v600, %v596
    %v1101 = vpack.c.b16 %v605, %v601
    %v1102 = vpack.c.b16 %v606, %v602
    %v1103 = vpack.c.b16 %v607, %v603
    %v1104 = vpack.c.b16 %v608, %v604
    %v1105 = vpack.c.b16 %v613, %v609
    %v1106 = vpack.c.b16 %v614, %v610
    %v1107 = vpack.c.b16 %v615, %v611
    %v1108 = vpack.c.b16 %v616, %v612
    %v1109 = vpack.c.b16 %v621, %v617
    %v1110 = vpack.c.b16 %v622, %v618
    %v1111 = vpack.c.b16 %v623, %v619
    %v1112 = vpack.c.b16 %v624, %v620
    %v1113 = vpack.c.b16 %v629, %v625
    %v1114 = vpack.c.b16 %v630, %v626
    %v1115 = vpack.c.b16 %v631, %v627
    %v1116 = vpack.c.b16 %v632, %v628
    %v1117 = vpack.c.b16 %v637, %v633
    %v1118 = vpack.c.b16 %v638, %v634
    %v1119 = vpack.c.b16 %v639, %v635
    %v1120 = vpack.c.b16 %v640, %v636
    %v1121 = vpack.c.b16 %v645, %v641
    %v1122 = vpack.c.b16 %v646, %v642
    %v1123 = vpack.c.b16 %v647, %v643
    %v1124 = vpack.c.b16 %v648, %v644
    %v1125 = vpack.c.b16 %v653, %v649
    %v1126 = vpack.c.b16 %v654, %v650
    %v1127 = vpack.c.b16 %v655, %v651
    %v1128 = vpack.c.b16 %v656, %v652
    %v1129 = vpack.c.b16 %v661, %v657
    %v1130 = vpack.c.b16 %v662, %v658
    %v1131 = vpack.c.b16 %v663, %v659
    %v1132 = vpack.c.b16 %v664, %v660
    %v1133 = vpack.c.b16 %v669, %v665
    %v1134 = vpack.c.b16 %v670, %v666
    %v1135 = vpack.c.b16 %v671, %v667
    %v1136 = vpack.c.b16 %v672, %v668
    %v1137 = vpack.c.b16 %v677, %v673
    %v1138 = vpack.c.b16 %v678, %v674
    %v1139 = vpack.c.b16 %v679, %v675
    %v1140 = vpack.c.b16 %v680, %v676
    %v1141 = vpack.c.b16 %v685, %v681
    %v1142 = vpack.c.b16 %v686, %v682
    %v1143 = vpack.c.b16 %v687, %v683
    %v1144 = vpack.c.b16 %v688, %v684
    %v1145 = vpack.c.b16 %v693, %v689
    %v1146 = vpack.c.b16 %v694, %v690
    %v1147 = vpack.c.b16 %v695, %v691
    %v1148 = vpack.c.b16 %v696, %v692
    %v1149 = vpack.c.b16 %v701, %v697
    %v1150 = vpack.c.b16 %v702, %v698
    %v1151 = vpack.c.b16 %v703, %v699
    %v1152 = vpack.c.b16 %v704, %v700
    %v1153 = vpack.c.b16 %v709, %v705
    %v1154 = vpack.c.b16 %v710, %v706
    %v1155 = vpack.c.b16 %v711, %v707
    %v1156 = vpack.c.b16 %v712, %v708
    %v1157 = vpack.c.b16 %v717, %v713
    %v1158 = vpack.c.b16 %v718, %v714
    %v1159 = vpack.c.b16 %v719, %v715
    %v1160 = vpack.c.b16 %v720, %v716
    %v1161 = vpack.c.b16 %v725, %v721
    %v1162 = vpack.c.b16 %v726, %v722
    %v1163 = vpack.c.b16 %v727, %v723
    %v1164 = vpack.c.b16 %v728, %v724
    %v1165 = vpack.c.b16 %v733, %v729
    %v1166 = vpack.c.b16 %v734, %v730
    %v1167 = vpack.c.b16 %v735, %v731
    %v1168 = vpack.c.b16 %v736, %v732
    %v1169 = vpack.c.b16 %v741, %v737
    %v1170 = vpack.c.b16 %v742, %v738
    %v1171 = vpack.c.b16 %v743, %v739
    %v1172 = vpack.c.b16 %v744, %v740
    %v1173 = vpack.c.b16 %v749, %v745
    %v1174 = vpack.c.b16 %v750, %v746
    %v1175 = vpack.c.b16 %v751, %v747
    %v1176 = vpack.c.b16 %v752, %v748
    %v1177 = vpack.c.b16 %v757, %v753
    %v1178 = vpack.c.b16 %v758, %v754
    %v1179 = vpack.c.b16 %v759, %v755
    %v1180 = vpack.c.b16 %v760, %v756
    %v1181 = vpack.c.b16 %v765, %v761
    %v1182 = vpack.c.b16 %v766, %v762
    %v1183 = vpack.c.b16 %v767, %v763
    %v1184 = vpack.c.b16 %v768, %v764
    %v1185 = vpack.c.b16 %v773, %v769
    %v1186 = vpack.c.b16 %v774, %v770
    %v1187 = vpack.c.b16 %v775, %v771
    %v1188 = vpack.c.b16 %v776, %v772
    %v1189 = vpack.c.b16 %v781, %v777
    %v1190 = vpack.c.b16 %v782, %v778
    %v1191 = vpack.c.b16 %v783, %v779
    %v1192 = vpack.c.b16 %v784, %v780
    %v1193 = vpack.c.b16 %v789, %v785
    %v1194 = vpack.c.b16 %v790, %v786
    %v1195 = vpack.c.b16 %v791, %v787
    %v1196 = vpack.c.b16 %v792, %v788
    %v1197 = vpack.c.b16 %v797, %v793
    %v1198 = vpack.c.b16 %v798, %v794
    %v1199 = vpack.c.b16 %v799, %v795
    %v1200 = vpack.c.b16 %v800, %v796
    %v1201 = vpack.c.b16 %v805, %v801
    %v1202 = vpack.c.b16 %v806, %v802
    %v1203 = vpack.c.b16 %v807, %v803
    %v1204 = vpack.c.b16 %v808, %v804
    %v1205 = vpack.c.b16 %v813, %v809
    %v1206 = vpack.c.b16 %v814, %v810
    %v1207 = vpack.c.b16 %v815, %v811
    %v1208 = vpack.c.b16 %v816, %v812
    %v1209 = vpack.c.b16 %v821, %v817
    %v1210 = vpack.c.b16 %v822, %v818
    %v1211 = vpack.c.b16 %v823, %v819
    %v1212 = vpack.c.b16 %v824, %v820
    %v1213 = vpack.c.b16 %v829, %v825
    %v1214 = vpack.c.b16 %v830, %v826
    %v1215 = vpack.c.b16 %v831, %v827
    %v1216 = vpack.c.b16 %v832, %v828
    %v1217 = vpack.c.b16 %v837, %v833
    %v1218 = vpack.c.b16 %v838, %v834
    %v1219 = vpack.c.b16 %v839, %v835
    %v1220 = vpack.c.b16 %v840, %v836
    %v1221 = vpack.c.b16 %v845, %v841
    %v1222 = vpack.c.b16 %v846, %v842
    %v1223 = vpack.c.b16 %v847, %v843
    %v1224 = vpack.c.b16 %v848, %v844
    %v1225 = vpack.c.b16 %v853, %v849
    %v1226 = vpack.c.b16 %v854, %v850
    %v1227 = vpack.c.b16 %v855, %v851
    %v1228 = vpack.c.b16 %v856, %v852
    %v1229 = vpack.c.b16 %v861, %v857
    %v1230 = vpack.c.b16 %v862, %v858
    %v1231 = vpack.c.b16 %v863, %v859
    %v1232 = vpack.c.b16 %v864, %v860
    %v1233 = vpack.c.b16 %v869, %v865
    %v1234 = vpack.c.b16 %v870, %v866
    %v1235 = vpack.c.b16 %v871, %v867
    %v1236 = vpack.c.b16 %v872, %v868
    %v1237 = vpack.c.b16 %v877, %v873
    %v1238 = vpack.c.b16 %v878, %v874
    %v1239 = vpack.c.b16 %v879, %v875
    %v1240 = vpack.c.b16 %v880, %v876
    %v1241 = vpack.c.b16 %v885, %v881
    %v1242 = vpack.c.b16 %v886, %v882
    %v1243 = vpack.c.b16 %v887, %v883
    %v1244 = vpack.c.b16 %v888, %v884
    %v1245 = vpack.c.b16 %v893, %v889
    %v1246 = vpack.c.b16 %v894, %v890
    %v1247 = vpack.c.b16 %v895, %v891
    %v1248 = vpack.c.b16 %v896, %v892
    %v1249 = vpack.c.b16 %v901, %v897
    %v1250 = vpack.c.b16 %v902, %v898
    %v1251 = vpack.c.b16 %v903, %v899
    %v1252 = vpack.c.b16 %v904, %v900
    %v1253 = vpack.c.b16 %v909, %v905
    %v1254 = vpack.c.b16 %v910, %v906
    %v1255 = vpack.c.b16 %v911, %v907
    %v1256 = vpack.c.b16 %v912, %v908
    %v1257 = vpack.c.b16 %v917, %v913
    %v1258 = vpack.c.b16 %v918, %v914
    %v1259 = vpack.c.b16 %v919, %v915
    %v1260 = vpack.c.b16 %v920, %v916
    %v1261 = vpack.c.b16 %v925, %v921
    %v1262 = vpack.c.b16 %v926, %v922
    %v1263 = vpack.c.b16 %v927, %v923
    %v1264 = vpack.c.b16 %v928, %v924
    %v1265 = vpack.c.b16 %v933, %v929
    %v1266 = vpack.c.b16 %v934, %v930
    %v1267 = vpack.c.b16 %v935, %v931
    %v1268 = vpack.c.b16 %v936, %v932
    %v1269 = vpack.c.b16 %v941, %v937
    %v1270 = vpack.c.b16 %v942, %v938
    %v1271 = vpack.c.b16 %v943, %v939
    %v1272 = vpack.c.b16 %v944, %v940
    %v1273 = vpack.c.b16 %v949, %v945
    %v1274 = vpack.c.b16 %v950, %v946
    %v1275 = vpack.c.b16 %v951, %v947
    %v1276 = vpack.c.b16 %v952, %v948
    %v1277 = vpack.c.b16 %v957, %v953
    %v1278 = vpack.c.b16 %v958, %v954
    %v1279 = vpack.c.b16 %v959, %v955
    %v1280 = vpack.c.b16 %v960, %v956
    %v1281 = vpack.c.b16 %v965, %v961
    %v1282 = vpack.c.b16 %v966, %v962
    %v1283 = vpack.c.b16 %v967, %v963
    %v1284 = vpack.c.b16 %v968, %v964
    %v1285 = vpack.c.b16 %v973, %v969
    %v1286 = vpack.c.b16 %v974, %v970
    %v1287 = vpack.c.b16 %v975, %v971
    %v1288 = vpack.c.b16 %v976, %v972
    %v1289 = vpack.c.b16 %v981, %v977
    %v1290 = vpack.c.b16 %v982, %v978
    %v1291 = vpack.c.b16 %v983, %v979
    %v1292 = vpack.c.b16 %v984, %v980
    %v1293 = vpack.c.b16 %v989, %v985
    %v1294 = vpack.c.b16 %v990, %v986
    %v1295 = vpack.c.b16 %v991, %v987
    %v1296 = vpack.c.b16 %v992, %v988
    %v1297 = vpack.c.b16 %v997, %v993
    %v1298 = vpack.c.b16 %v998, %v994
    %v1299 = vpack.c.b16 %v999, %v995
    %v1300 = vpack.c.b16 %v1000, %v996
    %v1301 = vpack.c.b16 %v1005, %v1001
    %v1302 = vpack.c.b16 %v1006, %v1002
    %v1303 = vpack.c.b16 %v1007, %v1003
    %v1304 = vpack.c.b16 %v1008, %v1004
    %v1305 = vpack.c.b16 %v1013, %v1009
    %v1306 = vpack.c.b16 %v1014, %v1010
    %v1307 = vpack.c.b16 %v1015, %v1011
    %v1308 = vpack.c.b16 %v1016, %v1012
    %v1309 = vpack.c.b16 %v1021, %v1017
    %v1310 = vpack.c.b16 %v1022, %v1018
    %v1311 = vpack.c.b16 %v1023, %v1019
    %v1312 = vpack.c.b16 %v1024, %v1020
    %v1313 = vpack.c.b16 %v1029, %v1025
    %v1314 = vpack.c.b16 %v1030, %v1026
    %v1315 = vpack.c.b16 %v1031, %v1027
    %v1316 = vpack.c.b16 %v1032, %v1028
    %v1317 = vpack.c.b16 %v1037, %v1033
    %v1318 = vpack.c.b16 %v1038, %v1034
    %v1319 = vpack.c.b16 %v1039, %v1035
    %v1320 = vpack.c.b16 %v1040, %v1036
    %v1321 = vpack.c.b16 %v1045, %v1041
    %v1322 = vpack.c.b16 %v1046, %v1042
    %v1323 = vpack.c.b16 %v1047, %v1043
    %v1324 = vpack.c.b16 %v1048, %v1044
    %v1325 = vpack.c.b16 %v1053, %v1049
    %v1326 = vpack.c.b16 %v1054, %v1050
    %v1327 = vpack.c.b16 %v1055, %v1051
    %v1328 = vpack.c.b16 %v1056, %v1052
    %v1329 = vpack.c.b16 %v1061, %v1057
    %v1330 = vpack.c.b16 %v1062, %v1058
    %v1331 = vpack.c.b16 %v1063, %v1059
    %v1332 = vpack.c.b16 %v1064, %v1060
    %v1333 = vpack.c.b16 %v1069, %v1065
    %v1334 = vpack.c.b16 %v1070, %v1066
    %v1335 = vpack.c.b16 %v1071, %v1067
    %v1336 = vpack.c.b16 %v1072, %v1068
    %v1337 = vpack.c.b16 %v1077, %v1073
    %v1338 = vpack.c.b16 %v1078, %v1074
    %v1339 = vpack.c.b16 %v1079, %v1075
    %v1340 = vpack.c.b16 %v1080, %v1076
    %v1341 = vpack.c.b16 %v1085, %v1081
    %v1342 = vpack.c.b16 %v1086, %v1082
    %v1343 = vpack.c.b16 %v1087, %v1083
    %v1344 = vpack.c.b16 %v1088, %v1084
    %1601 = vmatprep.subr.bf16.mxu0 %v1090
    %1602 = vmatpush1.bf16.msra.mxu0 %v1089
    %1603 = vmatprep.subr.bf16.mxu0 %v1094
    %1604 = vmatpush1.bf16.msra.mxu0 %v1093
    %1605 = vmatprep.subr.bf16.mxu0 %v1098
    %1606 = vmatpush1.bf16.msra.mxu0 %v1097
    %1607 = vmatprep.subr.bf16.mxu0 %v1102
    %1608 = vmatpush1.bf16.msra.mxu0 %v1101
    %1609 = vmatprep.subr.bf16.mxu0 %v1106
    %1610 = vmatpush1.bf16.msra.mxu0 %v1105
    %1611 = vmatprep.subr.bf16.mxu0 %v1110
    %1612 = vmatpush1.bf16.msra.mxu0 %v1109
    %1613 = vmatprep.subr.bf16.mxu0 %v1114
    %1614 = vmatpush1.bf16.msra.mxu0 %v1113
    %1615 = vmatprep.subr.bf16.mxu0 %v1118
    %1616 = vmatpush1.bf16.msra.mxu0 %v1117
    %1617 = vmatprep.subr.bf16.mxu0 %v1122
    %1618 = vmatpush1.bf16.msra.mxu0 %v1121
    %1619 = vmatprep.subr.bf16.mxu0 %v1126
    %1620 = vmatpush1.bf16.msra.mxu0 %v1125
    %1621 = vmatprep.subr.bf16.mxu0 %v1130
    %1622 = vmatpush1.bf16.msra.mxu0 %v1129
    %1623 = vmatprep.subr.bf16.mxu0 %v1134
    %1624 = vmatpush1.bf16.msra.mxu0 %v1133
    %1625 = vmatprep.subr.bf16.mxu0 %v1138
    %1626 = vmatpush1.bf16.msra.mxu0 %v1137
    %1627 = vmatprep.subr.bf16.mxu0 %v1142
    %1628 = vmatpush1.bf16.msra.mxu0 %v1141
    %1629 = vmatprep.subr.bf16.mxu0 %v1146
    %1630 = vmatpush1.bf16.msra.mxu0 %v1145
    %1631 = vmatprep.subr.bf16.mxu0 %v1150
    %1632 = vmatpush1.bf16.msra.mxu0 %v1149
    %1633 = vmatprep.mubr.bf16.mxu0 %v58
    %1634 = vmatmul.mubr.bf16.gmra.mrb[0].mxu0 %v57
    %v1635 = vpop.f32.mrb[0].mxu0
    %v1636 = vadd.f32 0.0, %v1635
    %v1637 = vpop.f32.mrb[0].mxu0
    %v1638 = vadd.f32 0.0, %v1637
    %v1639 = vpop.f32.mrb[0].mxu0
    %v1640 = vpop.f32.mrb[0].mxu0
    %1641 = vdwg.mxu0
    %1642 = vmatprep.subr.bf16.mxu0 %v1154
    %1643 = vmatpush1.bf16.msra.mxu0 %v1153
    %1644 = vmatprep.subr.bf16.mxu0 %v1158
    %1645 = vmatpush1.bf16.msra.mxu0 %v1157
    %1646 = vmatprep.subr.bf16.mxu0 %v1162
    %1647 = vmatpush1.bf16.msra.mxu0 %v1161
    %1648 = vmatprep.subr.bf16.mxu0 %v1166
    %1649 = vmatpush1.bf16.msra.mxu0 %v1165
    %1650 = vmatprep.subr.bf16.mxu0 %v1170
    %1651 = vmatpush1.bf16.msra.mxu0 %v1169
    %1652 = vmatprep.subr.bf16.mxu0 %v1174
    %1653 = vmatpush1.bf16.msra.mxu0 %v1173
    %1654 = vmatprep.subr.bf16.mxu0 %v1178
    %1655 = vmatpush1.bf16.msra.mxu0 %v1177
    %1656 = vmatprep.subr.bf16.mxu0 %v1182
    %1657 = vmatpush1.bf16.msra.mxu0 %v1181
    %1658 = vmatprep.subr.bf16.mxu0 %v1186
    %1659 = vmatpush1.bf16.msra.mxu0 %v1185
    %1660 = vmatprep.subr.bf16.mxu0 %v1190
    %1661 = vmatpush1.bf16.msra.mxu0 %v1189
    %1662 = vmatprep.subr.bf16.mxu0 %v1194
    %1663 = vmatpush1.bf16.msra.mxu0 %v1193
    %1664 = vmatprep.subr.bf16.mxu0 %v1198
    %1665 = vmatpush1.bf16.msra.mxu0 %v1197
    %1666 = vmatprep.subr.bf16.mxu0 %v1202
    %1667 = vmatpush1.bf16.msra.mxu0 %v1201
    %1668 = vmatprep.subr.bf16.mxu0 %v1206
    %1669 = vmatpush1.bf16.msra.mxu0 %v1205
    %1670 = vmatprep.subr.bf16.mxu0 %v1210
    %1671 = vmatpush1.bf16.msra.mxu0 %v1209
    %1672 = vmatprep.subr.bf16.mxu0 %v1214
    %1673 = vmatpush1.bf16.msra.mxu0 %v1213
    %1674 = vmatprep.mubr.bf16.mxu0 %v60
    %1675 = vmatmul.mubr.bf16.gmra.mrb[0].mxu0 %v59
    %v1676 = vpop.f32.mrb[0].mxu0
    %v1677 = vadd.f32 %v1636, %v1676
    %v1678 = vpop.f32.mrb[0].mxu0
    %v1679 = vadd.f32 %v1638, %v1678
    %v1680 = vpop.f32.mrb[0].mxu0
    %v1681 = vpop.f32.mrb[0].mxu0
    %1682 = vdwg.mxu0
    %1683 = vmatprep.subr.bf16.mxu0 %v1218
    %1684 = vmatpush1.bf16.msra.mxu0 %v1217
    %1685 = vmatprep.subr.bf16.mxu0 %v1222
    %1686 = vmatpush1.bf16.msra.mxu0 %v1221
    %1687 = vmatprep.subr.bf16.mxu0 %v1226
    %1688 = vmatpush1.bf16.msra.mxu0 %v1225
    %1689 = vmatprep.subr.bf16.mxu0 %v1230
    %1690 = vmatpush1.bf16.msra.mxu0 %v1229
    %1691 = vmatprep.subr.bf16.mxu0 %v1234
    %1692 = vmatpush1.bf16.msra.mxu0 %v1233
    %1693 = vmatprep.subr.bf16.mxu0 %v1238
    %1694 = vmatpush1.bf16.msra.mxu0 %v1237
    %1695 = vmatprep.subr.bf16.mxu0 %v1242
    %1696 = vmatpush1.bf16.msra.mxu0 %v1241
    %1697 = vmatprep.subr.bf16.mxu0 %v1246
    %1698 = vmatpush1.bf16.msra.mxu0 %v1245
    %1699 = vmatprep.subr.bf16.mxu0 %v1250
    %1700 = vmatpush1.bf16.msra.mxu0 %v1249
    %1701 = vmatprep.subr.bf16.mxu0 %v1254
    %1702 = vmatpush1.bf16.msra.mxu0 %v1253
    %1703 = vmatprep.subr.bf16.mxu0 %v1258
    %1704 = vmatpush1.bf16.msra.mxu0 %v1257
    %1705 = vmatprep.subr.bf16.mxu0 %v1262
    %1706 = vmatpush1.bf16.msra.mxu0 %v1261
    %1707 = vmatprep.subr.bf16.mxu0 %v1266
    %1708 = vmatpush1.bf16.msra.mxu0 %v1265
    %1709 = vmatprep.subr.bf16.mxu0 %v1270
    %1710 = vmatpush1.bf16.msra.mxu0 %v1269
    %1711 = vmatprep.subr.bf16.mxu0 %v1274
    %1712 = vmatpush1.bf16.msra.mxu0 %v1273
    %1713 = vmatprep.subr.bf16.mxu0 %v1278
    %1714 = vmatpush1.bf16.msra.mxu0 %v1277
    %1715 = vmatprep.mubr.bf16.mxu0 %v62
    %1716 = vmatmul.mubr.bf16.gmra.mrb[0].mxu0 %v61
    %v1717 = vpop.f32.mrb[0].mxu0
    %v1718 = vadd.f32 %v1677, %v1717
    %v1719 = vpop.f32.mrb[0].mxu0
    %v1720 = vadd.f32 %v1679, %v1719
    %v1721 = vpop.f32.mrb[0].mxu0
    %v1722 = vpop.f32.mrb[0].mxu0
    %1723 = vdwg.mxu0
    %1724 = vmatprep.subr.bf16.mxu0 %v1282
    %1725 = vmatpush1.bf16.msra.mxu0 %v1281
    %1726 = vmatprep.subr.bf16.mxu0 %v1286
    %1727 = vmatpush1.bf16.msra.mxu0 %v1285
    %1728 = vmatprep.subr.bf16.mxu0 %v1290
    %1729 = vmatpush1.bf16.msra.mxu0 %v1289
    %1730 = vmatprep.subr.bf16.mxu0 %v1294
    %1731 = vmatpush1.bf16.msra.mxu0 %v1293
    %1732 = vmatprep.subr.bf16.mxu0 %v1298
    %1733 = vmatpush1.bf16.msra.mxu0 %v1297
    %1734 = vmatprep.subr.bf16.mxu0 %v1302
    %1735 = vmatpush1.bf16.msra.mxu0 %v1301
    %1736 = vmatprep.subr.bf16.mxu0 %v1306
    %1737 = vmatpush1.bf16.msra.mxu0 %v1305
    %1738 = vmatprep.subr.bf16.mxu0 %v1310
    %1739 = vmatpush1.bf16.msra.mxu0 %v1309
    %1740 = vmatprep.subr.bf16.mxu0 %v1314
    %1741 = vmatpush1.bf16.msra.mxu0 %v1313
    %1742 = vmatprep.subr.bf16.mxu0 %v1318
    %1743 = vmatpush1.bf16.msra.mxu0 %v1317
    %1744 = vmatprep.subr.bf16.mxu0 %v1322
    %1745 = vmatpush1.bf16.msra.mxu0 %v1321
    %1746 = vmatprep.subr.bf16.mxu0 %v1326
    %1747 = vmatpush1.bf16.msra.mxu0 %v1325
    %1748 = vmatprep.subr.bf16.mxu0 %v1330
    %1749 = vmatpush1.bf16.msra.mxu0 %v1329
    %1750 = vmatprep.subr.bf16.mxu0 %v1334
    %1751 = vmatpush1.bf16.msra.mxu0 %v1333
    %1752 = vmatprep.subr.bf16.mxu0 %v1338
    %1753 = vmatpush1.bf16.msra.mxu0 %v1337
    %1754 = vmatprep.subr.bf16.mxu0 %v1342
    %1755 = vmatpush1.bf16.msra.mxu0 %v1341
    %1756 = vmatprep.mubr.bf16.mxu0 %v64
    %1757 = vmatmul.mubr.bf16.gmra.mrb[0].mxu0 %v63
    %v1758 = vpop.f32.mrb[0].mxu0
    %v1759 = vadd.f32 %v1718, %v1758
    %v1760 = vpop.f32.mrb[0].mxu0
    %v1761 = vadd.f32 %v1720, %v1760
    %v1762 = vpop.f32.mrb[0].mxu0
    %v1763 = vpop.f32.mrb[0].mxu0
    %1764 = vdwg.mxu0
    %1765 = vmatprep.subr.bf16.mxu0 %v1092
    %1766 = vmatpush1.bf16.msra.mxu0 %v1091
    %1767 = vmatprep.subr.bf16.mxu0 %v1096
    %1768 = vmatpush1.bf16.msra.mxu0 %v1095
    %1769 = vmatprep.subr.bf16.mxu0 %v1100
    %1770 = vmatpush1.bf16.msra.mxu0 %v1099
    %1771 = vmatprep.subr.bf16.mxu0 %v1104
    %1772 = vmatpush1.bf16.msra.mxu0 %v1103
    %1773 = vmatprep.subr.bf16.mxu0 %v1108
    %1774 = vmatpush1.bf16.msra.mxu0 %v1107
    %1775 = vmatprep.subr.bf16.mxu0 %v1112
    %1776 = vmatpush1.bf16.msra.mxu0 %v1111
    %1777 = vmatprep.subr.bf16.mxu0 %v1116
    %1778 = vmatpush1.bf16.msra.mxu0 %v1115
    %1779 = vmatprep.subr.bf16.mxu0 %v1120
    %1780 = vmatpush1.bf16.msra.mxu0 %v1119
    %1781 = vmatprep.subr.bf16.mxu0 %v1124
    %1782 = vmatpush1.bf16.msra.mxu0 %v1123
    %1783 = vmatprep.subr.bf16.mxu0 %v1128
    %1784 = vmatpush1.bf16.msra.mxu0 %v1127
    %1785 = vmatprep.subr.bf16.mxu0 %v1132
    %1786 = vmatpush1.bf16.msra.mxu0 %v1131
    %1787 = vmatprep.subr.bf16.mxu0 %v1136
    %1788 = vmatpush1.bf16.msra.mxu0 %v1135
    %1789 = vmatprep.subr.bf16.mxu0 %v1140
    %1790 = vmatpush1.bf16.msra.mxu0 %v1139
    %1791 = vmatprep.subr.bf16.mxu0 %v1144
    %1792 = vmatpush1.bf16.msra.mxu0 %v1143
    %1793 = vmatprep.subr.bf16.mxu0 %v1148
    %1794 = vmatpush1.bf16.msra.mxu0 %v1147
    %1795 = vmatprep.subr.bf16.mxu0 %v1152
    %1796 = vmatpush1.bf16.msra.mxu0 %v1151
    %1797 = vmatprep.mubr.bf16.mxu0 %v58
    %1798 = vmatmul.mubr.bf16.gmra.mrb[0].mxu0 %v57
    %v1799 = vpop.f32.mrb[0].mxu0
    %v1800 = vadd.f32 0.0, %v1799
    %v1801 = vpop.f32.mrb[0].mxu0
    %v1802 = vadd.f32 0.0, %v1801
    %v1803 = vpop.f32.mrb[0].mxu0
    %v1804 = vpop.f32.mrb[0].mxu0
    %1805 = vdwg.mxu0
    %1806 = vmatprep.subr.bf16.mxu0 %v1156
    %1807 = vmatpush1.bf16.msra.mxu0 %v1155
    %1808 = vmatprep.subr.bf16.mxu0 %v1160
    %1809 = vmatpush1.bf16.msra.mxu0 %v1159
    %1810 = vmatprep.subr.bf16.mxu0 %v1164
    %1811 = vmatpush1.bf16.msra.mxu0 %v1163
    %1812 = vmatprep.subr.bf16.mxu0 %v1168
    %1813 = vmatpush1.bf16.msra.mxu0 %v1167
    %1814 = vmatprep.subr.bf16.mxu0 %v1172
    %1815 = vmatpush1.bf16.msra.mxu0 %v1171
    %1816 = vmatprep.subr.bf16.mxu0 %v1176
    %1817 = vmatpush1.bf16.msra.mxu0 %v1175
    %1818 = vmatprep.subr.bf16.mxu0 %v1180
    %1819 = vmatpush1.bf16.msra.mxu0 %v1179
    %1820 = vmatprep.subr.bf16.mxu0 %v1184
    %1821 = vmatpush1.bf16.msra.mxu0 %v1183
    %1822 = vmatprep.subr.bf16.mxu0 %v1188
    %1823 = vmatpush1.bf16.msra.mxu0 %v1187
    %1824 = vmatprep.subr.bf16.mxu0 %v1192
    %1825 = vmatpush1.bf16.msra.mxu0 %v1191
    %1826 = vmatprep.subr.bf16.mxu0 %v1196
    %1827 = vmatpush1.bf16.msra.mxu0 %v1195
    %1828 = vmatprep.subr.bf16.mxu0 %v1200
    %1829 = vmatpush1.bf16.msra.mxu0 %v1199
    %1830 = vmatprep.subr.bf16.mxu0 %v1204
    %1831 = vmatpush1.bf16.msra.mxu0 %v1203
    %1832 = vmatprep.subr.bf16.mxu0 %v1208
    %1833 = vmatpush1.bf16.msra.mxu0 %v1207
    %1834 = vmatprep.subr.bf16.mxu0 %v1212
    %1835 = vmatpush1.bf16.msra.mxu0 %v1211
    %1836 = vmatprep.subr.bf16.mxu0 %v1216
    %1837 = vmatpush1.bf16.msra.mxu0 %v1215
    %1838 = vmatprep.mubr.bf16.mxu0 %v60
    %1839 = vmatmul.mubr.bf16.gmra.mrb[0].mxu0 %v59
    %v1840 = vpop.f32.mrb[0].mxu0
    %v1841 = vadd.f32 %v1800, %v1840
    %v1842 = vpop.f32.mrb[0].mxu0
    %v1843 = vadd.f32 %v1802, %v1842
    %v1844 = vpop.f32.mrb[0].mxu0
    %v1845 = vpop.f32.mrb[0].mxu0
    %1846 = vdwg.mxu0
    %1847 = vmatprep.subr.bf16.mxu0 %v1220
    %1848 = vmatpush1.bf16.msra.mxu0 %v1219
    %1849 = vmatprep.subr.bf16.mxu0 %v1224
    %1850 = vmatpush1.bf16.msra.mxu0 %v1223
    %1851 = vmatprep.subr.bf16.mxu0 %v1228
    %1852 = vmatpush1.bf16.msra.mxu0 %v1227
    %1853 = vmatprep.subr.bf16.mxu0 %v1232
    %1854 = vmatpush1.bf16.msra.mxu0 %v1231
    %1855 = vmatprep.subr.bf16.mxu0 %v1236
    %1856 = vmatpush1.bf16.msra.mxu0 %v1235
    %1857 = vmatprep.subr.bf16.mxu0 %v1240
    %1858 = vmatpush1.bf16.msra.mxu0 %v1239
    %1859 = vmatprep.subr.bf16.mxu0 %v1244
    %1860 = vmatpush1.bf16.msra.mxu0 %v1243
    %1861 = vmatprep.subr.bf16.mxu0 %v1248
    %1862 = vmatpush1.bf16.msra.mxu0 %v1247
    %1863 = vmatprep.subr.bf16.mxu0 %v1252
    %1864 = vmatpush1.bf16.msra.mxu0 %v1251
    %1865 = vmatprep.subr.bf16.mxu0 %v1256
    %1866 = vmatpush1.bf16.msra.mxu0 %v1255
    %1867 = vmatprep.subr.bf16.mxu0 %v1260
    %1868 = vmatpush1.bf16.msra.mxu0 %v1259
    %1869 = vmatprep.subr.bf16.mxu0 %v1264
    %1870 = vmatpush1.bf16.msra.mxu0 %v1263
    %1871 = vmatprep.subr.bf16.mxu0 %v1268
    %1872 = vmatpush1.bf16.msra.mxu0 %v1267
    %1873 = vmatprep.subr.bf16.mxu0 %v1272
    %1874 = vmatpush1.bf16.msra.mxu0 %v1271
    %1875 = vmatprep.subr.bf16.mxu0 %v1276
    %1876 = vmatpush1.bf16.msra.mxu0 %v1275
    %1877 = vmatprep.subr.bf16.mxu0 %v1280
    %1878 = vmatpush1.bf16.msra.mxu0 %v1279
    %1879 = vmatprep.mubr.bf16.mxu0 %v62
    %1880 = vmatmul.mubr.bf16.gmra.mrb[0].mxu0 %v61
    %v1881 = vpop.f32.mrb[0].mxu0
    %v1882 = vadd.f32 %v1841, %v1881
    %v1883 = vpop.f32.mrb[0].mxu0
    %v1884 = vadd.f32 %v1843, %v1883
    %v1885 = vpop.f32.mrb[0].mxu0
    %v1886 = vpop.f32.mrb[0].mxu0
    %1887 = vdwg.mxu0
    %1888 = vmatprep.subr.bf16.mxu0 %v1284
    %1889 = vmatpush1.bf16.msra.mxu0 %v1283
    %1890 = vmatprep.subr.bf16.mxu0 %v1288
    %1891 = vmatpush1.bf16.msra.mxu0 %v1287
    %1892 = vmatprep.subr.bf16.mxu0 %v1292
    %1893 = vmatpush1.bf16.msra.mxu0 %v1291
    %1894 = vmatprep.subr.bf16.mxu0 %v1296
    %1895 = vmatpush1.bf16.msra.mxu0 %v1295
    %1896 = vmatprep.subr.bf16.mxu0 %v1300
    %1897 = vmatpush1.bf16.msra.mxu0 %v1299
    %1898 = vmatprep.subr.bf16.mxu0 %v1304
    %1899 = vmatpush1.bf16.msra.mxu0 %v1303
    %1900 = vmatprep.subr.bf16.mxu0 %v1308
    %1901 = vmatpush1.bf16.msra.mxu0 %v1307
    %1902 = vmatprep.subr.bf16.mxu0 %v1312
    %1903 = vmatpush1.bf16.msra.mxu0 %v1311
    %1904 = vmatprep.subr.bf16.mxu0 %v1316
    %1905 = vmatpush1.bf16.msra.mxu0 %v1315
    %1906 = vmatprep.subr.bf16.mxu0 %v1320
    %1907 = vmatpush1.bf16.msra.mxu0 %v1319
    %1908 = vmatprep.subr.bf16.mxu0 %v1324
    %1909 = vmatpush1.bf16.msra.mxu0 %v1323
    %1910 = vmatprep.subr.bf16.mxu0 %v1328
    %1911 = vmatpush1.bf16.msra.mxu0 %v1327
    %1912 = vmatprep.subr.bf16.mxu0 %v1332
    %1913 = vmatpush1.bf16.msra.mxu0 %v1331
    %1914 = vmatprep.subr.bf16.mxu0 %v1336
    %1915 = vmatpush1.bf16.msra.mxu0 %v1335
    %1916 = vmatprep.subr.bf16.mxu0 %v1340
    %1917 = vmatpush1.bf16.msra.mxu0 %v1339
    %1918 = vmatprep.subr.bf16.mxu0 %v1344
    %1919 = vmatpush1.bf16.msra.mxu0 %v1343
    %1920 = vmatprep.mubr.bf16.mxu0 %v64
    %1921 = vmatmul.mubr.bf16.gmra.mrb[0].mxu0 %v63
    %v1922 = vpop.f32.mrb[0].mxu0
    %v1923 = vadd.f32 %v1882, %v1922
    %v1924 = vpop.f32.mrb[0].mxu0
    %v1925 = vadd.f32 %v1884, %v1924
    %v1926 = vpop.f32.mrb[0].mxu0
    %v1927 = vpop.f32.mrb[0].mxu0
    %1928 = vdwg.mxu0
    %v1929 = vmax.f32 %v1759, 0.0
    %v1930 = vmax.f32 %v1761, 0.0
    %v1931 = vmax.f32 %v1923, 0.0
    %v1932 = vmax.f32 %v1925, 0.0
    %v1933 = vpack.c.bf16 %v1929, %v1929
    %v1934 = vpack.c.bf16 %v1930, %v1930
    %v1935 = vpack.c.bf16 %v1931, %v1931
    %v1936 = vpack.c.bf16 %v1932, %v1932
    %v1937 = vld [vmem:[#allocation4] sm:$0xff]
    %v1938 = vld [vmem:[#allocation4 + $0x8] sm:$0xff]
    %v1939 = vld [vmem:[#allocation4 + $0x10] sm:$0xff]
    %v1940 = vld [vmem:[#allocation4 + $0x18] sm:$0xff]
    %v1941 = vld [vmem:[#allocation4 + $0x20] sm:$0xff]
    %v1942 = vld [vmem:[#allocation4 + $0x28] sm:$0xff]
    %v1943 = vld [vmem:[#allocation4 + $0x30] sm:$0xff]
    %v1944 = vld [vmem:[#allocation4 + $0x38] sm:$0xff]
    %v1945 = vld [vmem:[#allocation4 + $0x40] sm:$0xff]
    %v1946 = vld [vmem:[#allocation4 + $0x48] sm:$0xff]
    %v1947 = vld [vmem:[#allocation4 + $0x50] sm:$0xff]
    %v1948 = vld [vmem:[#allocation4 + $0x58] sm:$0xff]
    %v1949 = vld [vmem:[#allocation4 + $0x60] sm:$0xff]
    %v1950 = vld [vmem:[#allocation4 + $0x68] sm:$0xff]
    %v1951 = vld [vmem:[#allocation4 + $0x70] sm:$0xff]
    %v1952 = vld [vmem:[#allocation4 + $0x78] sm:$0xff]
    %v1953 = vld [vmem:[#allocation4 + $0x80] sm:$0xff]
    %v1954 = vld [vmem:[#allocation4 + $0x88] sm:$0xff]
    %v1955 = vld [vmem:[#allocation4 + $0x90] sm:$0xff]
    %v1956 = vld [vmem:[#allocation4 + $0x98] sm:$0xff]
    %v1957 = vld [vmem:[#allocation4 + $0xa0] sm:$0xff]
    %v1958 = vld [vmem:[#allocation4 + $0xa8] sm:$0xff]
    %v1959 = vld [vmem:[#allocation4 + $0xb0] sm:$0xff]
    %v1960 = vld [vmem:[#allocation4 + $0xb8] sm:$0xff]
    %v1961 = vld [vmem:[#allocation4 + $0xc0] sm:$0xff]
    %v1962 = vld [vmem:[#allocation4 + $0xc8] sm:$0xff]
    %v1963 = vld [vmem:[#allocation4 + $0xd0] sm:$0xff]
    %v1964 = vld [vmem:[#allocation4 + $0xd8] sm:$0xff]
    %v1965 = vld [vmem:[#allocation4 + $0xe0] sm:$0xff]
    %v1966 = vld [vmem:[#allocation4 + $0xe8] sm:$0xff]
    %v1967 = vld [vmem:[#allocation4 + $0xf0] sm:$0xff]
    %v1968 = vld [vmem:[#allocation4 + $0xf8] sm:$0xff]
    %v1969 = vld [vmem:[#allocation4 + $0x100] sm:$0xff]
    %v1970 = vld [vmem:[#allocation4 + $0x108] sm:$0xff]
    %v1971 = vld [vmem:[#allocation4 + $0x110] sm:$0xff]
    %v1972 = vld [vmem:[#allocation4 + $0x118] sm:$0xff]
    %v1973 = vld [vmem:[#allocation4 + $0x120] sm:$0xff]
    %v1974 = vld [vmem:[#allocation4 + $0x128] sm:$0xff]
    %v1975 = vld [vmem:[#allocation4 + $0x130] sm:$0xff]
    %v1976 = vld [vmem:[#allocation4 + $0x138] sm:$0xff]
    %v1977 = vld [vmem:[#allocation4 + $0x140] sm:$0xff]
    %v1978 = vld [vmem:[#allocation4 + $0x148] sm:$0xff]
    %v1979 = vld [vmem:[#allocation4 + $0x150] sm:$0xff]
    %v1980 = vld [vmem:[#allocation4 + $0x158] sm:$0xff]
    %v1981 = vld [vmem:[#allocation4 + $0x160] sm:$0xff]
    %v1982 = vld [vmem:[#allocation4 + $0x168] sm:$0xff]
    %v1983 = vld [vmem:[#allocation4 + $0x170] sm:$0xff]
    %v1984 = vld [vmem:[#allocation4 + $0x178] sm:$0xff]
    %v1985 = vld [vmem:[#allocation4 + $0x180] sm:$0xff]
    %v1986 = vld [vmem:[#allocation4 + $0x188] sm:$0xff]
    %v1987 = vld [vmem:[#allocation4 + $0x190] sm:$0xff]
    %v1988 = vld [vmem:[#allocation4 + $0x198] sm:$0xff]
    %v1989 = vld [vmem:[#allocation4 + $0x1a0] sm:$0xff]
    %v1990 = vld [vmem:[#allocation4 + $0x1a8] sm:$0xff]
    %v1991 = vld [vmem:[#allocation4 + $0x1b0] sm:$0xff]
    %v1992 = vld [vmem:[#allocation4 + $0x1b8] sm:$0xff]
    %v1993 = vld [vmem:[#allocation4 + $0x1c0] sm:$0xff]
    %v1994 = vld [vmem:[#allocation4 + $0x1c8] sm:$0xff]
    %v1995 = vld [vmem:[#allocation4 + $0x1d0] sm:$0xff]
    %v1996 = vld [vmem:[#allocation4 + $0x1d8] sm:$0xff]
    %v1997 = vld [vmem:[#allocation4 + $0x1e0] sm:$0xff]
    %v1998 = vld [vmem:[#allocation4 + $0x1e8] sm:$0xff]
    %v1999 = vld [vmem:[#allocation4 + $0x1f0] sm:$0xff]
    %v2000 = vld [vmem:[#allocation4 + $0x1f8] sm:$0xff]
    %v2065 = vunpack.c.l.b16 %v1937
    %v2066 = vunpack.c.h.b16 %v1937
    %v2067 = vunpack.c.l.b16 %v1938
    %v2068 = vunpack.c.h.b16 %v1938
    %v2069 = vunpack.c.l.b16 %v1939
    %v2070 = vunpack.c.h.b16 %v1939
    %v2071 = vunpack.c.l.b16 %v1940
    %v2072 = vunpack.c.h.b16 %v1940
    %v2073 = vunpack.c.l.b16 %v1941
    %v2074 = vunpack.c.h.b16 %v1941
    %v2075 = vunpack.c.l.b16 %v1942
    %v2076 = vunpack.c.h.b16 %v1942
    %v2077 = vunpack.c.l.b16 %v1943
    %v2078 = vunpack.c.h.b16 %v1943
    %v2079 = vunpack.c.l.b16 %v1944
    %v2080 = vunpack.c.h.b16 %v1944
    %v2081 = vunpack.c.l.b16 %v1945
    %v2082 = vunpack.c.h.b16 %v1945
    %v2083 = vunpack.c.l.b16 %v1946
    %v2084 = vunpack.c.h.b16 %v1946
    %v2085 = vunpack.c.l.b16 %v1947
    %v2086 = vunpack.c.h.b16 %v1947
    %v2087 = vunpack.c.l.b16 %v1948
    %v2088 = vunpack.c.h.b16 %v1948
    %v2089 = vunpack.c.l.b16 %v1949
    %v2090 = vunpack.c.h.b16 %v1949
    %v2091 = vunpack.c.l.b16 %v1950
    %v2092 = vunpack.c.h.b16 %v1950
    %v2093 = vunpack.c.l.b16 %v1951
    %v2094 = vunpack.c.h.b16 %v1951
    %v2095 = vunpack.c.l.b16 %v1952
    %v2096 = vunpack.c.h.b16 %v1952
    %v2097 = vunpack.c.l.b16 %v1953
    %v2098 = vunpack.c.h.b16 %v1953
    %v2099 = vunpack.c.l.b16 %v1954
    %v2100 = vunpack.c.h.b16 %v1954
    %v2101 = vunpack.c.l.b16 %v1955
    %v2102 = vunpack.c.h.b16 %v1955
    %v2103 = vunpack.c.l.b16 %v1956
    %v2104 = vunpack.c.h.b16 %v1956
    %v2105 = vunpack.c.l.b16 %v1957
    %v2106 = vunpack.c.h.b16 %v1957
    %v2107 = vunpack.c.l.b16 %v1958
    %v2108 = vunpack.c.h.b16 %v1958
    %v2109 = vunpack.c.l.b16 %v1959
    %v2110 = vunpack.c.h.b16 %v1959
    %v2111 = vunpack.c.l.b16 %v1960
    %v2112 = vunpack.c.h.b16 %v1960
    %v2113 = vunpack.c.l.b16 %v1961
    %v2114 = vunpack.c.h.b16 %v1961
    %v2115 = vunpack.c.l.b16 %v1962
    %v2116 = vunpack.c.h.b16 %v1962
    %v2117 = vunpack.c.l.b16 %v1963
    %v2118 = vunpack.c.h.b16 %v1963
    %v2119 = vunpack.c.l.b16 %v1964
    %v2120 = vunpack.c.h.b16 %v1964
    %v2121 = vunpack.c.l.b16 %v1965
    %v2122 = vunpack.c.h.b16 %v1965
    %v2123 = vunpack.c.l.b16 %v1966
    %v2124 = vunpack.c.h.b16 %v1966
    %v2125 = vunpack.c.l.b16 %v1967
    %v2126 = vunpack.c.h.b16 %v1967
    %v2127 = vunpack.c.l.b16 %v1968
    %v2128 = vunpack.c.h.b16 %v1968
    %v2129 = vunpack.c.l.b16 %v1969
    %v2130 = vunpack.c.h.b16 %v1969
    %v2131 = vunpack.c.l.b16 %v1970
    %v2132 = vunpack.c.h.b16 %v1970
    %v2133 = vunpack.c.l.b16 %v1971
    %v2134 = vunpack.c.h.b16 %v1971
    %v2135 = vunpack.c.l.b16 %v1972
    %v2136 = vunpack.c.h.b16 %v1972
    %v2137 = vunpack.c.l.b16 %v1973
    %v2138 = vunpack.c.h.b16 %v1973
    %v2139 = vunpack.c.l.b16 %v1974
    %v2140 = vunpack.c.h.b16 %v1974
    %v2141 = vunpack.c.l.b16 %v1975
    %v2142 = vunpack.c.h.b16 %v1975
    %v2143 = vunpack.c.l.b16 %v1976
    %v2144 = vunpack.c.h.b16 %v1976
    %v2145 = vunpack.c.l.b16 %v1977
    %v2146 = vunpack.c.h.b16 %v1977
    %v2147 = vunpack.c.l.b16 %v1978
    %v2148 = vunpack.c.h.b16 %v1978
    %v2149 = vunpack.c.l.b16 %v1979
    %v2150 = vunpack.c.h.b16 %v1979
    %v2151 = vunpack.c.l.b16 %v1980
    %v2152 = vunpack.c.h.b16 %v1980
    %v2153 = vunpack.c.l.b16 %v1981
    %v2154 = vunpack.c.h.b16 %v1981
    %v2155 = vunpack.c.l.b16 %v1982
    %v2156 = vunpack.c.h.b16 %v1982
    %v2157 = vunpack.c.l.b16 %v1983
    %v2158 = vunpack.c.h.b16 %v1983
    %v2159 = vunpack.c.l.b16 %v1984
    %v2160 = vunpack.c.h.b16 %v1984
    %v2161 = vunpack.c.l.b16 %v1985
    %v2162 = vunpack.c.h.b16 %v1985
    %v2163 = vunpack.c.l.b16 %v1986
    %v2164 = vunpack.c.h.b16 %v1986
    %v2165 = vunpack.c.l.b16 %v1987
    %v2166 = vunpack.c.h.b16 %v1987
    %v2167 = vunpack.c.l.b16 %v1988
    %v2168 = vunpack.c.h.b16 %v1988
    %v2169 = vunpack.c.l.b16 %v1989
    %v2170 = vunpack.c.h.b16 %v1989
    %v2171 = vunpack.c.l.b16 %v1990
    %v2172 = vunpack.c.h.b16 %v1990
    %v2173 = vunpack.c.l.b16 %v1991
    %v2174 = vunpack.c.h.b16 %v1991
    %v2175 = vunpack.c.l.b16 %v1992
    %v2176 = vunpack.c.h.b16 %v1992
    %v2177 = vunpack.c.l.b16 %v1993
    %v2178 = vunpack.c.h.b16 %v1993
    %v2179 = vunpack.c.l.b16 %v1994
    %v2180 = vunpack.c.h.b16 %v1994
    %v2181 = vunpack.c.l.b16 %v1995
    %v2182 = vunpack.c.h.b16 %v1995
    %v2183 = vunpack.c.l.b16 %v1996
    %v2184 = vunpack.c.h.b16 %v1996
    %v2185 = vunpack.c.l.b16 %v1997
    %v2186 = vunpack.c.h.b16 %v1997
    %v2187 = vunpack.c.l.b16 %v1998
    %v2188 = vunpack.c.h.b16 %v1998
    %v2189 = vunpack.c.l.b16 %v1999
    %v2190 = vunpack.c.h.b16 %v1999
    %v2191 = vunpack.c.l.b16 %v2000
    %v2192 = vunpack.c.h.b16 %v2000
    %v2193 = vpack.c.b16 %v2067, %v2065
    %v2194 = vpack.c.b16 %v2068, %v2066
    %v2195 = vpack.c.b16 %v2071, %v2069
    %v2196 = vpack.c.b16 %v2072, %v2070
    %v2197 = vpack.c.b16 %v2075, %v2073
    %v2198 = vpack.c.b16 %v2076, %v2074
    %v2199 = vpack.c.b16 %v2079, %v2077
    %v2200 = vpack.c.b16 %v2080, %v2078
    %v2201 = vpack.c.b16 %v2083, %v2081
    %v2202 = vpack.c.b16 %v2084, %v2082
    %v2203 = vpack.c.b16 %v2087, %v2085
    %v2204 = vpack.c.b16 %v2088, %v2086
    %v2205 = vpack.c.b16 %v2091, %v2089
    %v2206 = vpack.c.b16 %v2092, %v2090
    %v2207 = vpack.c.b16 %v2095, %v2093
    %v2208 = vpack.c.b16 %v2096, %v2094
    %v2209 = vpack.c.b16 %v2099, %v2097
    %v2210 = vpack.c.b16 %v2100, %v2098
    %v2211 = vpack.c.b16 %v2103, %v2101
    %v2212 = vpack.c.b16 %v2104, %v2102
    %v2213 = vpack.c.b16 %v2107, %v2105
    %v2214 = vpack.c.b16 %v2108, %v2106
    %v2215 = vpack.c.b16 %v2111, %v2109
    %v2216 = vpack.c.b16 %v2112, %v2110
    %v2217 = vpack.c.b16 %v2115, %v2113
    %v2218 = vpack.c.b16 %v2116, %v2114
    %v2219 = vpack.c.b16 %v2119, %v2117
    %v2220 = vpack.c.b16 %v2120, %v2118
    %v2221 = vpack.c.b16 %v2123, %v2121
    %v2222 = vpack.c.b16 %v2124, %v2122
    %v2223 = vpack.c.b16 %v2127, %v2125
    %v2224 = vpack.c.b16 %v2128, %v2126
    %v2225 = vpack.c.b16 %v2131, %v2129
    %v2226 = vpack.c.b16 %v2132, %v2130
    %v2227 = vpack.c.b16 %v2135, %v2133
    %v2228 = vpack.c.b16 %v2136, %v2134
    %v2229 = vpack.c.b16 %v2139, %v2137
    %v2230 = vpack.c.b16 %v2140, %v2138
    %v2231 = vpack.c.b16 %v2143, %v2141
    %v2232 = vpack.c.b16 %v2144, %v2142
    %v2233 = vpack.c.b16 %v2147, %v2145
    %v2234 = vpack.c.b16 %v2148, %v2146
    %v2235 = vpack.c.b16 %v2151, %v2149
    %v2236 = vpack.c.b16 %v2152, %v2150
    %v2237 = vpack.c.b16 %v2155, %v2153
    %v2238 = vpack.c.b16 %v2156, %v2154
    %v2239 = vpack.c.b16 %v2159, %v2157
    %v2240 = vpack.c.b16 %v2160, %v2158
    %v2241 = vpack.c.b16 %v2163, %v2161
    %v2242 = vpack.c.b16 %v2164, %v2162
    %v2243 = vpack.c.b16 %v2167, %v2165
    %v2244 = vpack.c.b16 %v2168, %v2166
    %v2245 = vpack.c.b16 %v2171, %v2169
    %v2246 = vpack.c.b16 %v2172, %v2170
    %v2247 = vpack.c.b16 %v2175, %v2173
    %v2248 = vpack.c.b16 %v2176, %v2174
    %v2249 = vpack.c.b16 %v2179, %v2177
    %v2250 = vpack.c.b16 %v2180, %v2178
    %v2251 = vpack.c.b16 %v2183, %v2181
    %v2252 = vpack.c.b16 %v2184, %v2182
    %v2253 = vpack.c.b16 %v2187, %v2185
    %v2254 = vpack.c.b16 %v2188, %v2186
    %v2255 = vpack.c.b16 %v2191, %v2189
    %v2256 = vpack.c.b16 %v2192, %v2190
    %2321 = vmatprep.subr.bf16.mxu0 %v2194
    %2322 = vmatpush1.bf16.msra.mxu0 %v2193
    %2323 = vmatprep.subr.bf16.mxu0 %v2196
    %2324 = vmatpush1.bf16.msra.mxu0 %v2195
    %2325 = vmatprep.subr.bf16.mxu0 %v2198
    %2326 = vmatpush1.bf16.msra.mxu0 %v2197
    %2327 = vmatprep.subr.bf16.mxu0 %v2200
    %2328 = vmatpush1.bf16.msra.mxu0 %v2199
    %2329 = vmatprep.subr.bf16.mxu0 %v2202
    %2330 = vmatpush1.bf16.msra.mxu0 %v2201
    %2331 = vmatprep.subr.bf16.mxu0 %v2204
    %2332 = vmatpush1.bf16.msra.mxu0 %v2203
    %2333 = vmatprep.subr.bf16.mxu0 %v2206
    %2334 = vmatpush1.bf16.msra.mxu0 %v2205
    %2335 = vmatprep.subr.bf16.mxu0 %v2208
    %2336 = vmatpush1.bf16.msra.mxu0 %v2207
    %2337 = vmatprep.subr.bf16.mxu0 %v2210
    %2338 = vmatpush1.bf16.msra.mxu0 %v2209
    %2339 = vmatprep.subr.bf16.mxu0 %v2212
    %2340 = vmatpush1.bf16.msra.mxu0 %v2211
    %2341 = vmatprep.subr.bf16.mxu0 %v2214
    %2342 = vmatpush1.bf16.msra.mxu0 %v2213
    %2343 = vmatprep.subr.bf16.mxu0 %v2216
    %2344 = vmatpush1.bf16.msra.mxu0 %v2215
    %2345 = vmatprep.subr.bf16.mxu0 %v2218
    %2346 = vmatpush1.bf16.msra.mxu0 %v2217
    %2347 = vmatprep.subr.bf16.mxu0 %v2220
    %2348 = vmatpush1.bf16.msra.mxu0 %v2219
    %2349 = vmatprep.subr.bf16.mxu0 %v2222
    %2350 = vmatpush1.bf16.msra.mxu0 %v2221
    %2351 = vmatprep.subr.bf16.mxu0 %v2224
    %2352 = vmatpush1.bf16.msra.mxu0 %v2223
    %2353 = vmatprep.mubr.bf16.mxu0 %v1934
    %2354 = vmatmul.mubr.bf16.gmra.mrb[0].mxu0 %v1933
    %v2355 = vpop.f32.mrb[0].mxu0
    %v2356 = vadd.f32 0.0, %v2355
    %v2357 = vpop.f32.mrb[0].mxu0
    %v2358 = vadd.f32 0.0, %v2357
    %v2359 = vpop.f32.mrb[0].mxu0
    %v2360 = vpop.f32.mrb[0].mxu0
    %2361 = vdwg.mxu0
    %2362 = vmatprep.subr.bf16.mxu0 %v2226
    %2363 = vmatpush1.bf16.msra.mxu0 %v2225
    %2364 = vmatprep.subr.bf16.mxu0 %v2228
    %2365 = vmatpush1.bf16.msra.mxu0 %v2227
    %2366 = vmatprep.subr.bf16.mxu0 %v2230
    %2367 = vmatpush1.bf16.msra.mxu0 %v2229
    %2368 = vmatprep.subr.bf16.mxu0 %v2232
    %2369 = vmatpush1.bf16.msra.mxu0 %v2231
    %2370 = vmatprep.subr.bf16.mxu0 %v2234
    %2371 = vmatpush1.bf16.msra.mxu0 %v2233
    %2372 = vmatprep.subr.bf16.mxu0 %v2236
    %2373 = vmatpush1.bf16.msra.mxu0 %v2235
    %2374 = vmatprep.subr.bf16.mxu0 %v2238
    %2375 = vmatpush1.bf16.msra.mxu0 %v2237
    %2376 = vmatprep.subr.bf16.mxu0 %v2240
    %2377 = vmatpush1.bf16.msra.mxu0 %v2239
    %2378 = vmatprep.subr.bf16.mxu0 %v2242
    %2379 = vmatpush1.bf16.msra.mxu0 %v2241
    %2380 = vmatprep.subr.bf16.mxu0 %v2244
    %2381 = vmatpush1.bf16.msra.mxu0 %v2243
    %2382 = vmatprep.subr.bf16.mxu0 %v2246
    %2383 = vmatpush1.bf16.msra.mxu0 %v2245
    %2384 = vmatprep.subr.bf16.mxu0 %v2248
    %2385 = vmatpush1.bf16.msra.mxu0 %v2247
    %2386 = vmatprep.subr.bf16.mxu0 %v2250
    %2387 = vmatpush1.bf16.msra.mxu0 %v2249
    %2388 = vmatprep.subr.bf16.mxu0 %v2252
    %2389 = vmatpush1.bf16.msra.mxu0 %v2251
    %2390 = vmatprep.subr.bf16.mxu0 %v2254
    %2391 = vmatpush1.bf16.msra.mxu0 %v2253
    %2392 = vmatprep.subr.bf16.mxu0 %v2256
    %2393 = vmatpush1.bf16.msra.mxu0 %v2255
    %2394 = vmatprep.mubr.bf16.mxu0 %v1936
    %2395 = vmatmul.mubr.bf16.gmra.mrb[0].mxu0 %v1935
    %v2396 = vpop.f32.mrb[0].mxu0
    %v2397 = vadd.f32 %v2356, %v2396
    %v2398 = vpop.f32.mrb[0].mxu0
    %v2399 = vadd.f32 %v2358, %v2398
    %v2400 = vpop.f32.mrb[0].mxu0
    %v2401 = vpop.f32.mrb[0].mxu0
    %2402 = vdwg.mxu0
    %v2403 = vmax.f32 %v2397, 0.0
    %v2404 = vmax.f32 %v2399, 0.0
    %v2405 = vpack.c.bf16 %v2403, %v2403
    %v2406 = vpack.c.bf16 %v2404, %v2404
    %v2407 = vld [vmem:[%s3] sm:$0xf]
    %v2408 = vld [vmem:[%s3 + $0x4] sm:$0xf]
    %v2409 = vld [vmem:[%s3 + $0x8] sm:$0xf]
    %v2410 = vld [vmem:[%s3 + $0xc] sm:$0xf]
    %v2411 = vld [vmem:[%s3 + $0x10] sm:$0xf]
    %v2412 = vld [vmem:[%s3 + $0x14] sm:$0xf]
    %v2413 = vld [vmem:[%s3 + $0x18] sm:$0xf]
    %v2414 = vld [vmem:[%s3 + $0x1c] sm:$0xf]
    %v2415 = vld [vmem:[%s3 + $0x20] sm:$0xf]
    %v2416 = vld [vmem:[%s3 + $0x24] sm:$0xf]
    %v2417 = vld [vmem:[%s3 + $0x28] sm:$0xf]
    %v2418 = vld [vmem:[%s3 + $0x2c] sm:$0xf]
    %v2419 = vld [vmem:[%s3 + $0x30] sm:$0xf]
    %v2420 = vld [vmem:[%s3 + $0x34] sm:$0xf]
    %v2421 = vld [vmem:[%s3 + $0x38] sm:$0xf]
    %v2422 = vld [vmem:[%s3 + $0x3c] sm:$0xf]
    %v2423 = vld [vmem:[%s3 + $0x40] sm:$0xf]
    %v2424 = vld [vmem:[%s3 + $0x44] sm:$0xf]
    %v2425 = vld [vmem:[%s3 + $0x48] sm:$0xf]
    %v2426 = vld [vmem:[%s3 + $0x4c] sm:$0xf]
    %v2427 = vld [vmem:[%s3 + $0x50] sm:$0xf]
    %v2428 = vld [vmem:[%s3 + $0x54] sm:$0xf]
    %v2429 = vld [vmem:[%s3 + $0x58] sm:$0xf]
    %v2430 = vld [vmem:[%s3 + $0x5c] sm:$0xf]
    %v2431 = vld [vmem:[%s3 + $0x60] sm:$0xf]
    %v2432 = vld [vmem:[%s3 + $0x64] sm:$0xf]
    %v2433 = vld [vmem:[%s3 + $0x68] sm:$0xf]
    %v2434 = vld [vmem:[%s3 + $0x6c] sm:$0xf]
    %v2435 = vld [vmem:[%s3 + $0x70] sm:$0xf]
    %v2436 = vld [vmem:[%s3 + $0x74] sm:$0xf]
    %v2437 = vld [vmem:[%s3 + $0x78] sm:$0xf]
    %v2438 = vld [vmem:[%s3 + $0x7c] sm:$0xf]
    %v2439 = vld [vmem:[%s4] sm:$0x1]
    %v2441 = vlaneseq
    %v2442 = vshrl.u32 %v2441, 7
    %v2443 = vsub.s32 0, %v2442
    %v2444 = vrot.slane %v2439, %v2443
    %v2478 = vunpack.c.l.b16 %v2407
    %v2479 = vunpack.c.l.b16 %v2408
    %v2480 = vunpack.c.l.b16 %v2409
    %v2481 = vunpack.c.l.b16 %v2410
    %v2482 = vunpack.c.l.b16 %v2411
    %v2483 = vunpack.c.l.b16 %v2412
    %v2484 = vunpack.c.l.b16 %v2413
    %v2485 = vunpack.c.l.b16 %v2414
    %v2486 = vunpack.c.l.b16 %v2415
    %v2487 = vunpack.c.l.b16 %v2416
    %v2488 = vunpack.c.l.b16 %v2417
    %v2489 = vunpack.c.l.b16 %v2418
    %v2490 = vunpack.c.l.b16 %v2419
    %v2491 = vunpack.c.l.b16 %v2420
    %v2492 = vunpack.c.l.b16 %v2421
    %v2493 = vunpack.c.l.b16 %v2422
    %v2494 = vunpack.c.l.b16 %v2423
    %v2495 = vunpack.c.l.b16 %v2424
    %v2496 = vunpack.c.l.b16 %v2425
    %v2497 = vunpack.c.l.b16 %v2426
    %v2498 = vunpack.c.l.b16 %v2427
    %v2499 = vunpack.c.l.b16 %v2428
    %v2500 = vunpack.c.l.b16 %v2429
    %v2501 = vunpack.c.l.b16 %v2430
    %v2502 = vunpack.c.l.b16 %v2431
    %v2503 = vunpack.c.l.b16 %v2432
    %v2504 = vunpack.c.l.b16 %v2433
    %v2505 = vunpack.c.l.b16 %v2434
    %v2506 = vunpack.c.l.b16 %v2435
    %v2507 = vunpack.c.l.b16 %v2436
    %v2508 = vunpack.c.l.b16 %v2437
    %v2509 = vunpack.c.l.b16 %v2438
    %v2510 = vpack.c.b16 %v2479, %v2478
    %v2511 = vpack.c.b16 %v2481, %v2480
    %v2512 = vpack.c.b16 %v2483, %v2482
    %v2513 = vpack.c.b16 %v2485, %v2484
    %v2514 = vpack.c.b16 %v2487, %v2486
    %v2515 = vpack.c.b16 %v2489, %v2488
    %v2516 = vpack.c.b16 %v2491, %v2490
    %v2517 = vpack.c.b16 %v2493, %v2492
    %v2518 = vpack.c.b16 %v2495, %v2494
    %v2519 = vpack.c.b16 %v2497, %v2496
    %v2520 = vpack.c.b16 %v2499, %v2498
    %v2521 = vpack.c.b16 %v2501, %v2500
    %v2522 = vpack.c.b16 %v2503, %v2502
    %v2523 = vpack.c.b16 %v2505, %v2504
    %v2524 = vpack.c.b16 %v2507, %v2506
    %v2525 = vpack.c.b16 %v2509, %v2508
    %2542 = vmatprep.subr.bf16.mxu0 0
    %2543 = vmatpush1.bf16.msra.mxu0 %v2510
    %2544 = vmatprep.subr.bf16.mxu0 0
    %2545 = vmatpush1.bf16.msra.mxu0 %v2511
    %2546 = vmatprep.subr.bf16.mxu0 0
    %2547 = vmatpush1.bf16.msra.mxu0 %v2512
    %2548 = vmatprep.subr.bf16.mxu0 0
    %2549 = vmatpush1.bf16.msra.mxu0 %v2513
    %2550 = vmatprep.subr.bf16.mxu0 0
    %2551 = vmatpush1.bf16.msra.mxu0 %v2514
    %2552 = vmatprep.subr.bf16.mxu0 0
    %2553 = vmatpush1.bf16.msra.mxu0 %v2515
    %2554 = vmatprep.subr.bf16.mxu0 0
    %2555 = vmatpush1.bf16.msra.mxu0 %v2516
    %2556 = vmatprep.subr.bf16.mxu0 0
    %2557 = vmatpush1.bf16.msra.mxu0 %v2517
    %2558 = vmatprep.subr.bf16.mxu0 0
    %2559 = vmatpush1.bf16.msra.mxu0 %v2518
    %2560 = vmatprep.subr.bf16.mxu0 0
    %2561 = vmatpush1.bf16.msra.mxu0 %v2519
    %2562 = vmatprep.subr.bf16.mxu0 0
    %2563 = vmatpush1.bf16.msra.mxu0 %v2520
    %2564 = vmatprep.subr.bf16.mxu0 0
    %2565 = vmatpush1.bf16.msra.mxu0 %v2521
    %2566 = vmatprep.subr.bf16.mxu0 0
    %2567 = vmatpush1.bf16.msra.mxu0 %v2522
    %2568 = vmatprep.subr.bf16.mxu0 0
    %2569 = vmatpush1.bf16.msra.mxu0 %v2523
    %2570 = vmatprep.subr.bf16.mxu0 0
    %2571 = vmatpush1.bf16.msra.mxu0 %v2524
    %2572 = vmatprep.subr.bf16.mxu0 0
    %2573 = vmatpush1.bf16.msra.mxu0 %v2525
    %2574 = vmatprep.mubr.bf16.mxu0 %v2406
    %2575 = vmatmul.mubr.bf16.gmra.mrb[0].mxu0 %v2405
    %v2576 = vpop.f32.mrb[0].mxu0
    %v2577 = vadd.f32 %v2444, %v2576
    %v2578 = vpop.f32.mrb[0].mxu0
    %v2579 = vpop.f32.mrb[0].mxu0
    %v2580 = vpop.f32.mrb[0].mxu0
    %2581 = vdwg.mxu0
    %2582 = vst [vmem:[%s5] sm:$0xff] %v2577
    // Predicated region
    $region30: #{convnn_forward.1} parent=1 // pred_check
      _
    $region31: #{convnn_forward.1} parent=1 // pred_check_branch
      %2584 = sbr.rel (0) target = $region33
    $region32: #{convnn_forward.1} parent=1 // pred_region
      _
    $region33: #{convnn_forward.1} parent=1 // pred_fallthru
      _
    // Predicated region
    $region34: #{convnn_forward.1} parent=1 // pred_check
      _
    $region35: #{convnn_forward.1} parent=1 // pred_check_branch
      %2586 = sbr.rel (0) target = $region37
    $region36: #{convnn_forward.1} parent=1 // pred_region
      _
    $region37: #{convnn_forward.1} parent=1 // pred_fallthru
      _
    %2587 = vsyncpa [#allocation3], 1
    %2588 = vsyncpa [#allocation5], 1

</llo_original>
